<compile_context>
chip_gen: v7x
topology: tpu7x:2x2x1
jax: 0.10.0
libtpu: 0.0.40
codegen_flags: <defaults>
</compile_context>

<pallas_src>
import functools

import jax
import jax.numpy as jnp
from jax.experimental import pallas as pl
from jax.experimental.pallas import tpu as pltpu

_MiB = 1024 * 1024


def _round_up(n, m):
    return ((n + m - 1) // m) * m


def _cdiv(a, b):
    return -(-a // b)


def _pad2d(a, rows, cols):
    r, c = a.shape
    if r == rows and c == cols:
        return a
    return jnp.pad(a, ((0, rows - r), (0, cols - c)))


def _vmem_capacity_bytes():
    try:
        return int(pltpu.get_tpu_info().vmem_capacity_bytes)
    except Exception:
        return 64 * _MiB   # conservative fallback: v7x per-TensorCore VMEM


# ----------------------------------------------------------------------------
# Kernel
# ----------------------------------------------------------------------------
def _vae_kernel(
    x_ref, eps_ref,
    w1_ref, b1_ref, w2_ref, b2_ref,
    wml_ref, bml_ref,
    wd1_ref, bd1_ref, wd2_ref, bd2_ref, wd3_ref, bd3_ref,
    xrec_ref, mu_ref, logvar_ref, z_ref,
):
    lat_p = eps_ref.shape[-1]          # padded latent width (multiple of 128)
    wdt = w1_ref.dtype                 # matmul input dtype (bf16)

    x = x_ref[...]                     # already cast to wdt in the wrapper

    # ---- encoder: Linear -> ReLU -> Linear -> ReLU (bf16 MXU, f32 accum) ----
    h = jnp.dot(x, w1_ref[...], preferred_element_type=jnp.float32) + b1_ref[...]
    h = jnp.maximum(h, 0.0).astype(wdt)      # fold downcast into the layer
    h = jnp.dot(h, w2_ref[...], preferred_element_type=jnp.float32) + b2_ref[...]
    h = jnp.maximum(h, 0.0).astype(wdt)

    # ---- fused mu|logvar head: one wide matmul, slice at lane boundary ----
    ml = jnp.dot(h, wml_ref[...], preferred_element_type=jnp.float32) + bml_ref[...]
    mu = jnp.clip(ml[:, :lat_p], -10.0, 10.0)
    logvar = jnp.clip(ml[:, lat_p:], -10.0, 10.0)

    # ---- reparameterize (gaussian prior), f32 elementwise ----
    std = jnp.exp(0.5 * logvar)
    z = mu + eps_ref[...] * std

    # ---- decoder: Linear -> ReLU -> Linear -> ReLU -> Linear ----
    d = jnp.dot(z.astype(wdt), wd1_ref[...],
                preferred_element_type=jnp.float32) + bd1_ref[...]
    d = jnp.maximum(d, 0.0).astype(wdt)
    d = jnp.dot(d, wd2_ref[...], preferred_element_type=jnp.float32) + bd2_ref[...]
    d = jnp.maximum(d, 0.0).astype(wdt)
    x_recon = jnp.dot(d, wd3_ref[...],
                      preferred_element_type=jnp.float32) + bd3_ref[...]

    # ---- lane-dense stores (all last dims are multiples of 128) ----
    xrec_ref[...] = x_recon.astype(xrec_ref.dtype)
    mu_ref[...] = mu.astype(mu_ref.dtype)
    logvar_ref[...] = logvar.astype(logvar_ref.dtype)
    z_ref[...] = z.astype(z_ref.dtype)


# ----------------------------------------------------------------------------
# One-time weight packing (do NOT call per forward)
# ----------------------------------------------------------------------------
def pack_params(params, *, weight_dtype=jnp.bfloat16, lane_multiple=128):
    """Pad / fuse / cast weights once; returns a device pytree for the kernel.

    lane_multiple: 128 by default.  On v6e/v7x you may set 256 so K/N fill the
    256-wide MXU when the hidden size rounds up anyway.
    """
    input_dim, hidden_dim = params["w1"].shape
    latent_dim = params["wmu"].shape[1]
    in_p = _round_up(input_dim, lane_multiple)
    hid_p = _round_up(hidden_dim, lane_multiple)
    lat_p = _round_up(latent_dim, lane_multiple)
    wdt = weight_dtype

    packed = {
        "w1": _pad2d(params["w1"], in_p, hid_p).astype(wdt),
        "b1": _pad2d(params["b1"], 1, hid_p),
        "w2": _pad2d(params["w2"], hid_p, hid_p).astype(wdt),
        "b2": _pad2d(params["b2"], 1, hid_p),
        # fused mu|logvar head: [hid_p, 2*lat_p], slice boundary is lane-aligned
        "wml": jnp.concatenate(
            [_pad2d(params["wmu"], hid_p, lat_p),
             _pad2d(params["wlv"], hid_p, lat_p)], axis=1).astype(wdt),
        "bml": jnp.concatenate(
            [_pad2d(params["bmu"], 1, lat_p),
             _pad2d(params["blv"], 1, lat_p)], axis=1),
        "wd1": _pad2d(params["wd1"], lat_p, hid_p).astype(wdt),
        "bd1": _pad2d(params["bd1"], 1, hid_p),
        "wd2": _pad2d(params["wd2"], hid_p, hid_p).astype(wdt),
        "bd2": _pad2d(params["bd2"], 1, hid_p),
        "wd3": _pad2d(params["wd3"], hid_p, in_p).astype(wdt),
        "bd3": _pad2d(params["bd3"], 1, in_p),
    }
    return jax.device_put(packed)


# ----------------------------------------------------------------------------
# Forward
# ----------------------------------------------------------------------------
@functools.partial(jax.jit, static_argnames=("batch_tile",))
def prior_vae_forward(x, eps, packed, *, batch_tile=None):
    """Forward pass of PriorVAE (gaussian prior).

    Args:
      x:      [B, input_dim] float32
      eps:    [B, latent_dim] float32 standard-normal noise
      packed: output of pack_params (padded / fused / bf16 weights)
    Returns:
      (x_recon, mu, logvar, z), each [B, *] float32.
    """
    B, input_dim = x.shape
    latent_dim = eps.shape[1]

    # Padded feature widths come from the packed weights themselves.
    in_p, hid_p = packed["w1"].shape
    lat_p = packed["wd1"].shape[0]
    wdt = packed["w1"].dtype
    assert in_p >= input_dim and lat_p >= latent_dim

    weight_bytes = sum(int(v.size) * v.dtype.itemsize for v in packed.values())

    # ---- VMEM-aware batch tile selection (all Python ints at trace time) ----
    cap = _vmem_capacity_bytes()
    # per-batch-row VMEM bytes: ~6 live [*, hid_p] f32/bf16 temporaries +
    # double-buffered x/eps/output tiles.
    per_row = 32 * hid_p + 12 * in_p + 32 * lat_p
    budget = cap - weight_bytes - 12 * _MiB
    if budget > 8 * per_row:
        max_bt = min(512, (budget // per_row) // 8 * 8)
    else:
        max_bt = 8   # TODO(synk): K-tile weights once they no longer fit VMEM

    if batch_tile is None:
        # minimize batch padding; prefer >=2 grid steps so v7x megacore can
        # shard the "parallel" batch axis across both TensorCores.
        num_tiles = max(_cdiv(B, max_bt), 2) if B > 8 else 1
        bt = min(_round_up(_cdiv(B, num_tiles), 8), max_bt)
    else:
        bt = max(8, _round_up(batch_tile, 8))
    B_pad = _round_up(B, bt)
    grid = (B_pad // bt,)

    # ---- pad activations (zero fill is numerically inert); x in bf16 ----
    xp = _pad2d(x, B_pad, in_p).astype(wdt)
    epsp = _pad2d(eps, B_pad, lat_p)            # stays f32

    # ---- specs ----
    row = lambda feat: pl.BlockSpec((bt, feat), lambda i: (i, 0))

    def full(a):
        # grid-invariant: constant index_map, single buffer (no point
        # double-buffering a block that never changes).
        return pl.BlockSpec(a.shape, lambda i: (0, 0),
                            pipeline_mode=pl.Buffered(1))

    in_specs = [
        row(in_p),                 # x (bf16)
        row(lat_p),                # eps (f32)
        full(packed["w1"]), full(packed["b1"]),
        full(packed["w2"]), full(packed["b2"]),
        full(packed["wml"]), full(packed["bml"]),
        full(packed["wd1"]), full(packed["bd1"]),
        full(packed["wd2"]), full(packed["bd2"]),
        full(packed["wd3"]), full(packed["bd3"]),
    ]
    out_specs = [row(in_p), row(lat_p), row(lat_p), row(lat_p)]
    out_shape = [
        jax.ShapeDtypeStruct((B_pad, in_p), jnp.float32),
        jax.ShapeDtypeStruct((B_pad, lat_p), jnp.float32),
        jax.ShapeDtypeStruct((B_pad, lat_p), jnp.float32),
        jax.ShapeDtypeStruct((B_pad, lat_p), jnp.float32),
    ]

    # ---- VMEM limit: real footprint + headroom, below physical capacity ----
    est = weight_bytes + bt * per_row
    vmem_limit = int(min(est + 16 * _MiB, cap - 8 * _MiB))
    vmem_limit = max(vmem_limit, 16 * _MiB)

    # ---- cost estimate (lets XLA schedule pad/strip ops around the kernel) --
    flops = 2 * B_pad * (in_p * hid_p + hid_p * hid_p + hid_p * 2 * lat_p
                         + lat_p * hid_p + hid_p * hid_p + hid_p * in_p)
    io_bytes = (xp.size * xp.dtype.itemsize + epsp.size * 4
                + B_pad * (in_p + 3 * lat_p) * 4)
    cost = pl.CostEstimate(flops=int(flops),
                           transcendentals=int(B_pad * lat_p),
                           bytes_accessed=int(weight_bytes + io_bytes))

    x_recon, mu, logvar, z = pl.pallas_call(
        _vae_kernel,
        grid=grid,
        in_specs=in_specs,
        out_specs=out_specs,
        out_shape=out_shape,
        cost_estimate=cost,
        compiler_params=pltpu.CompilerParams(
            dimension_semantics=("parallel",),   # megacore sharding on v7x
            vmem_limit_bytes=vmem_limit,
        ),
    )(xp, epsp,
      packed["w1"], packed["b1"], packed["w2"], packed["b2"],
      packed["wml"], packed["bml"],
      packed["wd1"], packed["bd1"], packed["wd2"], packed["bd2"],
      packed["wd3"], packed["bd3"])

    # strip batch / feature padding
    return (x_recon[:B, :input_dim],
            mu[:B, :latent_dim],
            logvar[:B, :latent_dim],
            z[:B, :latent_dim])


# ----------------------------------------------------------------------------
# Param init + pure-JAX reference
# ----------------------------------------------------------------------------
def init_params(key, input_dim, hidden_dim, latent_dim):
    """Deterministic init mimicking nn.Linear's uniform(-1/sqrt(fan_in), ...)."""
    def linear(k, fan_in, fan_out):
        kw, kb = jax.random.split(k)
        bound = 1.0 / jnp.sqrt(fan_in)
        w = jax.random.uniform(kw, (fan_in, fan_out), jnp.float32, -bound, bound)
        b = jax.random.uniform(kb, (1, fan_out), jnp.float32, -bound, bound)
        return w, b

    keys = jax.random.split(key, 8)
    p = {}
    p["w1"], p["b1"] = linear(keys[0], input_dim, hidden_dim)
    p["w2"], p["b2"] = linear(keys[1], hidden_dim, hidden_dim)
    p["wmu"], p["bmu"] = linear(keys[2], hidden_dim, latent_dim)
    p["wlv"], p["blv"] = linear(keys[3], hidden_dim, latent_dim)
    p["wd1"], p["bd1"] = linear(keys[4], latent_dim, hidden_dim)
    p["wd2"], p["bd2"] = linear(keys[5], hidden_dim, hidden_dim)
    p["wd3"], p["bd3"] = linear(keys[6], hidden_dim, input_dim)
    return p


def reference_forward(x, eps, params, weight_dtype=jnp.float32):
    """Pure-JAX reference identical to PriorVAE.forward (gaussian prior).

    With weight_dtype=bf16 it mirrors the kernel's matmul precision exactly
    (bf16 inputs, f32 accumulation, f32 elementwise tail).
    """
    wdt = weight_dtype
    relu = lambda v: jnp.maximum(v, 0.0)
    dot = lambda a, w: jnp.dot(a.astype(wdt), w.astype(wdt),
                               preferred_element_type=jnp.float32)
    h = relu(dot(x, params["w1"]) + params["b1"])
    h = relu(dot(h, params["w2"]) + params["b2"])
    mu = jnp.clip(dot(h, params["wmu"]) + params["bmu"], -10.0, 10.0)
    logvar = jnp.clip(dot(h, params["wlv"]) + params["blv"], -10.0, 10.0)
    z = mu + eps * jnp.exp(0.5 * logvar)
    d = relu(dot(z, params["wd1"]) + params["bd1"])
    d = relu(dot(d, params["wd2"]) + params["bd2"])
    x_recon = dot(d, params["wd3"]) + params["bd3"]
    return x_recon, mu, logvar, z


if __name__ == "__main__":
    # Small shapes consistent with the module's forward.
    batch, input_dim, hidden_dim, latent_dim = 16, 64, 32, 16

    key = jax.random.PRNGKey(0)
    kx, keps, kparams = jax.random.split(key, 3)

    x = jax.random.normal(kx, (batch, input_dim), jnp.float32)
    eps = jax.random.normal(keps, (batch, latent_dim), jnp.float32)
    params = init_params(kparams, input_dim, hidden_dim, latent_dim)

    # Pack weights ONCE (pad / fuse / bf16); reuse across forward calls.
    packed = pack_params(params)

    out = prior_vae_forward(x, eps, packed)   # bt auto -> 8, grid=(2,)
    out = jax.block_until_ready(out)
    x_recon, mu, logvar, z = out

    # Tight check vs a reference using the same bf16 matmul precision.
    ref_bf16 = reference_forward(x, eps, params, weight_dtype=jnp.bfloat16)
    for got, want in zip(out, ref_bf16):
        assert got.shape == want.shape
        assert jnp.max(jnp.abs(got - want)) < 5e-3, "mismatch vs bf16 reference"

    # Loose sanity check vs the pure-f32 PriorVAE math (bf16 weight quantization).
    ref_f32 = reference_forward(x, eps, params, weight_dtype=jnp.float32)
    for got, want in zip(out, ref_f32):
        assert jnp.max(jnp.abs(got - want)) < 5e-2, "mismatch vs f32 reference"

    print("KERNEL_OK")
</pallas_src>

<mosaic_0001>
module attributes {stable_mosaic.version = 11 : i64} {
  func.func @_vae_kernel(%arg0: i32, %arg1: memref<8x128xbf16, #tpu.memory_space<vmem>>, %arg2: memref<8x128xf32, #tpu.memory_space<vmem>>, %arg3: memref<128x128xbf16, #tpu.memory_space<vmem>>, %arg4: memref<1x128xf32, #tpu.memory_space<vmem>>, %arg5: memref<128x128xbf16, #tpu.memory_space<vmem>>, %arg6: memref<1x128xf32, #tpu.memory_space<vmem>>, %arg7: memref<128x256xbf16, #tpu.memory_space<vmem>>, %arg8: memref<1x256xf32, #tpu.memory_space<vmem>>, %arg9: memref<128x128xbf16, #tpu.memory_space<vmem>>, %arg10: memref<1x128xf32, #tpu.memory_space<vmem>>, %arg11: memref<128x128xbf16, #tpu.memory_space<vmem>>, %arg12: memref<1x128xf32, #tpu.memory_space<vmem>>, %arg13: memref<128x128xbf16, #tpu.memory_space<vmem>>, %arg14: memref<1x128xf32, #tpu.memory_space<vmem>>, %arg15: memref<8x128xf32, #tpu.memory_space<vmem>>, %arg16: memref<8x128xf32, #tpu.memory_space<vmem>>, %arg17: memref<8x128xf32, #tpu.memory_space<vmem>>, %arg18: memref<8x128xf32, #tpu.memory_space<vmem>>) attributes {dimension_semantics = [#tpu.dimension_semantics<parallel>], iteration_bounds = array<i64: 2>, scalar_prefetch = 0 : i64, scratch_operands = 0 : i64, tpu.core_type = #tpu.core_type<tc>, window_params = [{transform_indices = @transform_0, window_bounds = array<i64: 8, 128>}, {transform_indices = @transform_1, window_bounds = array<i64: 8, 128>}, {pipeline_mode = #tpu.pipeline_mode<synchronous>, transform_indices = @transform_2, window_bounds = array<i64: 128, 128>}, {pipeline_mode = #tpu.pipeline_mode<synchronous>, transform_indices = @transform_3, window_bounds = array<i64: 1, 128>}, {pipeline_mode = #tpu.pipeline_mode<synchronous>, transform_indices = @transform_4, window_bounds = array<i64: 128, 128>}, {pipeline_mode = #tpu.pipeline_mode<synchronous>, transform_indices = @transform_5, window_bounds = array<i64: 1, 128>}, {pipeline_mode = #tpu.pipeline_mode<synchronous>, transform_indices = @transform_6, window_bounds = array<i64: 128, 256>}, {pipeline_mode = #tpu.pipeline_mode<synchronous>, transform_indices = @transform_7, window_bounds = array<i64: 1, 256>}, {pipeline_mode = #tpu.pipeline_mode<synchronous>, transform_indices = @transform_8, window_bounds = array<i64: 128, 128>}, {pipeline_mode = #tpu.pipeline_mode<synchronous>, transform_indices = @transform_9, window_bounds = array<i64: 1, 128>}, {pipeline_mode = #tpu.pipeline_mode<synchronous>, transform_indices = @transform_10, window_bounds = array<i64: 128, 128>}, {pipeline_mode = #tpu.pipeline_mode<synchronous>, transform_indices = @transform_11, window_bounds = array<i64: 1, 128>}, {pipeline_mode = #tpu.pipeline_mode<synchronous>, transform_indices = @transform_12, window_bounds = array<i64: 128, 128>}, {pipeline_mode = #tpu.pipeline_mode<synchronous>, transform_indices = @transform_13, window_bounds = array<i64: 1, 128>}, {transform_indices = @transform_14, window_bounds = array<i64: 8, 128>}, {transform_indices = @transform_15, window_bounds = array<i64: 8, 128>}, {transform_indices = @transform_16, window_bounds = array<i64: 8, 128>}, {transform_indices = @transform_17, window_bounds = array<i64: 8, 128>}]} {
    %c0 = arith.constant 0 : index
    %c0_0 = arith.constant 0 : index
    %0 = vector.load %arg1[%c0, %c0_0] : memref<8x128xbf16, #tpu.memory_space<vmem>>, vector<8x128xbf16>
    %c0_1 = arith.constant 0 : index
    %c0_2 = arith.constant 0 : index
    %1 = vector.load %arg3[%c0_1, %c0_2] : memref<128x128xbf16, #tpu.memory_space<vmem>>, vector<128x128xbf16>
    %cst = arith.constant dense<0.000000e+00> : vector<8x128xf32>
    %2 = tpu.matmul %0, %1, %cst {dimension_numbers = #tpu.dot_dimension_numbers<[1], [0], [0], [1], [0, 0, 1, 1], [], []>} : vector<8x128xbf16>, vector<128x128xbf16>, vector<8x128xf32> -> vector<8x128xf32>
    %c0_3 = arith.constant 0 : index
    %c0_4 = arith.constant 0 : index
    %3 = vector.load %arg4[%c0_3, %c0_4] : memref<1x128xf32, #tpu.memory_space<vmem>>, vector<1x128xf32>
    %4 = vector.broadcast %3 : vector<1x128xf32> to vector<8x128xf32>
    %5 = arith.addf %2, %4 : vector<8x128xf32>
    %cst_5 = arith.constant 0.000000e+00 : f32
    %6 = vector.broadcast %cst_5 : f32 to vector<8x128xf32>
    %7 = arith.maximumf %5, %6 : vector<8x128xf32>
    %8 = arith.truncf %7 : vector<8x128xf32> to vector<8x128xbf16>
    %c0_6 = arith.constant 0 : index
    %c0_7 = arith.constant 0 : index
    %9 = vector.load %arg5[%c0_6, %c0_7] : memref<128x128xbf16, #tpu.memory_space<vmem>>, vector<128x128xbf16>
    %cst_8 = arith.constant dense<0.000000e+00> : vector<8x128xf32>
    %10 = tpu.matmul %8, %9, %cst_8 {dimension_numbers = #tpu.dot_dimension_numbers<[1], [0], [0], [1], [0, 0, 1, 1], [], []>} : vector<8x128xbf16>, vector<128x128xbf16>, vector<8x128xf32> -> vector<8x128xf32>
    %c0_9 = arith.constant 0 : index
    %c0_10 = arith.constant 0 : index
    %11 = vector.load %arg6[%c0_9, %c0_10] : memref<1x128xf32, #tpu.memory_space<vmem>>, vector<1x128xf32>
    %12 = vector.broadcast %11 : vector<1x128xf32> to vector<8x128xf32>
    %13 = arith.addf %10, %12 : vector<8x128xf32>
    %cst_11 = arith.constant 0.000000e+00 : f32
    %14 = vector.broadcast %cst_11 : f32 to vector<8x128xf32>
    %15 = arith.maximumf %13, %14 : vector<8x128xf32>
    %16 = arith.truncf %15 : vector<8x128xf32> to vector<8x128xbf16>
    %c0_12 = arith.constant 0 : index
    %c0_13 = arith.constant 0 : index
    %17 = vector.load %arg7[%c0_12, %c0_13] : memref<128x256xbf16, #tpu.memory_space<vmem>>, vector<128x256xbf16>
    %cst_14 = arith.constant dense<0.000000e+00> : vector<8x256xf32>
    %18 = tpu.matmul %16, %17, %cst_14 {dimension_numbers = #tpu.dot_dimension_numbers<[1], [0], [0], [1], [0, 0, 1, 1], [], []>} : vector<8x128xbf16>, vector<128x256xbf16>, vector<8x256xf32> -> vector<8x256xf32>
    %c0_15 = arith.constant 0 : index
    %c0_16 = arith.constant 0 : index
    %19 = vector.load %arg8[%c0_15, %c0_16] : memref<1x256xf32, #tpu.memory_space<vmem>>, vector<1x256xf32>
    %20 = vector.broadcast %19 : vector<1x256xf32> to vector<8x256xf32>
    %21 = arith.addf %18, %20 : vector<8x256xf32>
    %22 = vector.extract_strided_slice %21 {offsets = [0, 0], sizes = [8, 128], strides = [1, 1]} : vector<8x256xf32> to vector<8x128xf32>
    %cst_17 = arith.constant -1.000000e+01 : f32
    %cst_18 = arith.constant 1.000000e+01 : f32
    %23 = vector.broadcast %cst_17 : f32 to vector<8x128xf32>
    %24 = arith.maximumf %23, %22 : vector<8x128xf32>
    %25 = vector.broadcast %cst_18 : f32 to vector<8x128xf32>
    %26 = arith.minimumf %25, %24 : vector<8x128xf32>
    %27 = vector.extract_strided_slice %21 {offsets = [0, 128], sizes = [8, 128], strides = [1, 1]} : vector<8x256xf32> to vector<8x128xf32>
    %cst_19 = arith.constant -1.000000e+01 : f32
    %cst_20 = arith.constant 1.000000e+01 : f32
    %28 = vector.broadcast %cst_19 : f32 to vector<8x128xf32>
    %29 = arith.maximumf %28, %27 : vector<8x128xf32>
    %30 = vector.broadcast %cst_20 : f32 to vector<8x128xf32>
    %31 = arith.minimumf %30, %29 : vector<8x128xf32>
    %cst_21 = arith.constant 5.000000e-01 : f32
    %32 = vector.broadcast %cst_21 : f32 to vector<8x128xf32>
    %33 = arith.mulf %32, %31 : vector<8x128xf32>
    %34 = math.exp %33 : vector<8x128xf32>
    %c0_22 = arith.constant 0 : index
    %c0_23 = arith.constant 0 : index
    %35 = vector.load %arg2[%c0_22, %c0_23] : memref<8x128xf32, #tpu.memory_space<vmem>>, vector<8x128xf32>
    %36 = arith.mulf %35, %34 : vector<8x128xf32>
    %37 = arith.addf %26, %36 : vector<8x128xf32>
    %38 = arith.truncf %37 : vector<8x128xf32> to vector<8x128xbf16>
    %c0_24 = arith.constant 0 : index
    %c0_25 = arith.constant 0 : index
    %39 = vector.load %arg9[%c0_24, %c0_25] : memref<128x128xbf16, #tpu.memory_space<vmem>>, vector<128x128xbf16>
    %cst_26 = arith.constant dense<0.000000e+00> : vector<8x128xf32>
    %40 = tpu.matmul %38, %39, %cst_26 {dimension_numbers = #tpu.dot_dimension_numbers<[1], [0], [0], [1], [0, 0, 1, 1], [], []>} : vector<8x128xbf16>, vector<128x128xbf16>, vector<8x128xf32> -> vector<8x128xf32>
    %c0_27 = arith.constant 0 : index
    %c0_28 = arith.constant 0 : index
    %41 = vector.load %arg10[%c0_27, %c0_28] : memref<1x128xf32, #tpu.memory_space<vmem>>, vector<1x128xf32>
    %42 = vector.broadcast %41 : vector<1x128xf32> to vector<8x128xf32>
    %43 = arith.addf %40, %42 : vector<8x128xf32>
    %cst_29 = arith.constant 0.000000e+00 : f32
    %44 = vector.broadcast %cst_29 : f32 to vector<8x128xf32>
    %45 = arith.maximumf %43, %44 : vector<8x128xf32>
    %46 = arith.truncf %45 : vector<8x128xf32> to vector<8x128xbf16>
    %c0_30 = arith.constant 0 : index
    %c0_31 = arith.constant 0 : index
    %47 = vector.load %arg11[%c0_30, %c0_31] : memref<128x128xbf16, #tpu.memory_space<vmem>>, vector<128x128xbf16>
    %cst_32 = arith.constant dense<0.000000e+00> : vector<8x128xf32>
    %48 = tpu.matmul %46, %47, %cst_32 {dimension_numbers = #tpu.dot_dimension_numbers<[1], [0], [0], [1], [0, 0, 1, 1], [], []>} : vector<8x128xbf16>, vector<128x128xbf16>, vector<8x128xf32> -> vector<8x128xf32>
    %c0_33 = arith.constant 0 : index
    %c0_34 = arith.constant 0 : index
    %49 = vector.load %arg12[%c0_33, %c0_34] : memref<1x128xf32, #tpu.memory_space<vmem>>, vector<1x128xf32>
    %50 = vector.broadcast %49 : vector<1x128xf32> to vector<8x128xf32>
    %51 = arith.addf %48, %50 : vector<8x128xf32>
    %cst_35 = arith.constant 0.000000e+00 : f32
    %52 = vector.broadcast %cst_35 : f32 to vector<8x128xf32>
    %53 = arith.maximumf %51, %52 : vector<8x128xf32>
    %54 = arith.truncf %53 : vector<8x128xf32> to vector<8x128xbf16>
    %c0_36 = arith.constant 0 : index
    %c0_37 = arith.constant 0 : index
    %55 = vector.load %arg13[%c0_36, %c0_37] : memref<128x128xbf16, #tpu.memory_space<vmem>>, vector<128x128xbf16>
    %cst_38 = arith.constant dense<0.000000e+00> : vector<8x128xf32>
    %56 = tpu.matmul %54, %55, %cst_38 {dimension_numbers = #tpu.dot_dimension_numbers<[1], [0], [0], [1], [0, 0, 1, 1], [], []>} : vector<8x128xbf16>, vector<128x128xbf16>, vector<8x128xf32> -> vector<8x128xf32>
    %c0_39 = arith.constant 0 : index
    %c0_40 = arith.constant 0 : index
    %57 = vector.load %arg14[%c0_39, %c0_40] : memref<1x128xf32, #tpu.memory_space<vmem>>, vector<1x128xf32>
    %58 = vector.broadcast %57 : vector<1x128xf32> to vector<8x128xf32>
    %59 = arith.addf %56, %58 : vector<8x128xf32>
    %c0_41 = arith.constant 0 : index
    %c0_42 = arith.constant 0 : index
    %60 = vector.load %arg15[%c0_41, %c0_42] : memref<8x128xf32, #tpu.memory_space<vmem>>, vector<8x128xf32>
    tpu.vector_store %arg15[%c0_41, %c0_42], %59 {strides = array<i32>} : memref<8x128xf32, #tpu.memory_space<vmem>>, vector<8x128xf32>,
    %c0_43 = arith.constant 0 : index
    %c0_44 = arith.constant 0 : index
    %61 = vector.load %arg16[%c0_43, %c0_44] : memref<8x128xf32, #tpu.memory_space<vmem>>, vector<8x128xf32>
    tpu.vector_store %arg16[%c0_43, %c0_44], %26 {strides = array<i32>} : memref<8x128xf32, #tpu.memory_space<vmem>>, vector<8x128xf32>,
    %c0_45 = arith.constant 0 : index
    %c0_46 = arith.constant 0 : index
    %62 = vector.load %arg17[%c0_45, %c0_46] : memref<8x128xf32, #tpu.memory_space<vmem>>, vector<8x128xf32>
    tpu.vector_store %arg17[%c0_45, %c0_46], %31 {strides = array<i32>} : memref<8x128xf32, #tpu.memory_space<vmem>>, vector<8x128xf32>,
    %c0_47 = arith.constant 0 : index
    %c0_48 = arith.constant 0 : index
    %63 = vector.load %arg18[%c0_47, %c0_48] : memref<8x128xf32, #tpu.memory_space<vmem>>, vector<8x128xf32>
    tpu.vector_store %arg18[%c0_47, %c0_48], %37 {strides = array<i32>} : memref<8x128xf32, #tpu.memory_space<vmem>>, vector<8x128xf32>,
    return
  }
  func.func @transform_0(%arg0: i32) -> (i32, i32) {
    %c0_i32 = arith.constant 0 : i32
    %c0_i32_0 = arith.constant 0 : i32
    return %arg0, %c0_i32 : i32, i32
  }
  func.func @transform_1(%arg0: i32) -> (i32, i32) {
    %c0_i32 = arith.constant 0 : i32
    %c0_i32_0 = arith.constant 0 : i32
    return %arg0, %c0_i32 : i32, i32
  }
  func.func @transform_2(%arg0: i32) -> (i32, i32) {
    %c0_i32 = arith.constant 0 : i32
    %c0_i32_0 = arith.constant 0 : i32
    %c0_i32_1 = arith.constant 0 : i32
    return %c0_i32, %c0_i32_0 : i32, i32
  }
  func.func @transform_3(%arg0: i32) -> (i32, i32) {
    %c0_i32 = arith.constant 0 : i32
    %c0_i32_0 = arith.constant 0 : i32
    %c0_i32_1 = arith.constant 0 : i32
    return %c0_i32, %c0_i32_0 : i32, i32
  }
  func.func @transform_4(%arg0: i32) -> (i32, i32) {
    %c0_i32 = arith.constant 0 : i32
    %c0_i32_0 = arith.constant 0 : i32
    %c0_i32_1 = arith.constant 0 : i32
    return %c0_i32, %c0_i32_0 : i32, i32
  }
  func.func @transform_5(%arg0: i32) -> (i32, i32) {
    %c0_i32 = arith.constant 0 : i32
    %c0_i32_0 = arith.constant 0 : i32
    %c0_i32_1 = arith.constant 0 : i32
    return %c0_i32, %c0_i32_0 : i32, i32
  }
  func.func @transform_6(%arg0: i32) -> (i32, i32) {
    %c0_i32 = arith.constant 0 : i32
    %c0_i32_0 = arith.constant 0 : i32
    %c0_i32_1 = arith.constant 0 : i32
    return %c0_i32, %c0_i32_0 : i32, i32
  }
  func.func @transform_7(%arg0: i32) -> (i32, i32) {
    %c0_i32 = arith.constant 0 : i32
    %c0_i32_0 = arith.constant 0 : i32
    %c0_i32_1 = arith.constant 0 : i32
    return %c0_i32, %c0_i32_0 : i32, i32
  }
  func.func @transform_8(%arg0: i32) -> (i32, i32) {
    %c0_i32 = arith.constant 0 : i32
    %c0_i32_0 = arith.constant 0 : i32
    %c0_i32_1 = arith.constant 0 : i32
    return %c0_i32, %c0_i32_0 : i32, i32
  }
  func.func @transform_9(%arg0: i32) -> (i32, i32) {
    %c0_i32 = arith.constant 0 : i32
    %c0_i32_0 = arith.constant 0 : i32
    %c0_i32_1 = arith.constant 0 : i32
    return %c0_i32, %c0_i32_0 : i32, i32
  }
  func.func @transform_10(%arg0: i32) -> (i32, i32) {
    %c0_i32 = arith.constant 0 : i32
    %c0_i32_0 = arith.constant 0 : i32
    %c0_i32_1 = arith.constant 0 : i32
    return %c0_i32, %c0_i32_0 : i32, i32
  }
  func.func @transform_11(%arg0: i32) -> (i32, i32) {
    %c0_i32 = arith.constant 0 : i32
    %c0_i32_0 = arith.constant 0 : i32
    %c0_i32_1 = arith.constant 0 : i32
    return %c0_i32, %c0_i32_0 : i32, i32
  }
  func.func @transform_12(%arg0: i32) -> (i32, i32) {
    %c0_i32 = arith.constant 0 : i32
    %c0_i32_0 = arith.constant 0 : i32
    %c0_i32_1 = arith.constant 0 : i32
    return %c0_i32, %c0_i32_0 : i32, i32
  }
  func.func @transform_13(%arg0: i32) -> (i32, i32) {
    %c0_i32 = arith.constant 0 : i32
    %c0_i32_0 = arith.constant 0 : i32
    %c0_i32_1 = arith.constant 0 : i32
    return %c0_i32, %c0_i32_0 : i32, i32
  }
  func.func @transform_14(%arg0: i32) -> (i32, i32) {
    %c0_i32 = arith.constant 0 : i32
    %c0_i32_0 = arith.constant 0 : i32
    return %arg0, %c0_i32 : i32, i32
  }
  func.func @transform_15(%arg0: i32) -> (i32, i32) {
    %c0_i32 = arith.constant 0 : i32
    %c0_i32_0 = arith.constant 0 : i32
    return %arg0, %c0_i32 : i32, i32
  }
  func.func @transform_16(%arg0: i32) -> (i32, i32) {
    %c0_i32 = arith.constant 0 : i32
    %c0_i32_0 = arith.constant 0 : i32
    return %arg0, %c0_i32 : i32, i32
  }
  func.func @transform_17(%arg0: i32) -> (i32, i32) {
    %c0_i32 = arith.constant 0 : i32
    %c0_i32_0 = arith.constant 0 : i32
    return %arg0, %c0_i32 : i32, i32
  }
}

</mosaic_0001>

<llo_original>
// kernel: prior_vae_forward.1
$region0: #{prior_vae_forward.1}
  #allocation0 [shape = 'u32[]', space=smem, size = 0x4, offset = 0x4, fixed_abs, tag = 'smem constant byte address 0x4 - core index']
  #allocation1 [shape = 'u32[144,128]{1,0:T(1,128)}', space=vmem, size = 0x12000, scoped, tag = 'internal scratch']
  %s0 = inlined_call_operand.vmem [shape: bf16[16,128], index: 0, kind: input, shape index: {}]
  %s1 = inlined_call_operand.vmem [shape: f32[16,128], index: 1, kind: input, shape index: {}]
  %s2 = inlined_call_operand.vmem [shape: bf16[128,128], index: 2, kind: input, shape index: {}]
  %s3 = inlined_call_operand.vmem [shape: f32[1,128], index: 3, kind: input, shape index: {}]
  %s4 = inlined_call_operand.hbm [shape: bf16[128,128], index: 4, kind: input, shape index: {}]
  %s5 = inlined_call_operand.vmem [shape: f32[1,128], index: 5, kind: input, shape index: {}]
  %s6 = inlined_call_operand.hbm [shape: bf16[128,256], index: 6, kind: input, shape index: {}]
  %s7 = inlined_call_operand.vmem [shape: f32[1,256], index: 7, kind: input, shape index: {}]
  %s8 = inlined_call_operand.hbm [shape: bf16[128,128], index: 8, kind: input, shape index: {}]
  %s9 = inlined_call_operand.vmem [shape: f32[1,128], index: 9, kind: input, shape index: {}]
  %s10 = inlined_call_operand.hbm [shape: bf16[128,128], index: 10, kind: input, shape index: {}]
  %s11 = inlined_call_operand.vmem [shape: f32[1,128], index: 11, kind: input, shape index: {}]
  %s12 = inlined_call_operand.hbm [shape: bf16[128,128], index: 12, kind: input, shape index: {}]
  %s13 = inlined_call_operand.vmem [shape: f32[1,128], index: 13, kind: input, shape index: {}]
  %s14 = inlined_call_operand.hbm [shape: f32[16,128], index: 14, kind: output, shape index: {0}]
  %s15 = inlined_call_operand.hbm [shape: f32[16,128], index: 15, kind: output, shape index: {1}]
  %s16 = inlined_call_operand.hbm [shape: f32[16,128], index: 16, kind: output, shape index: {2}]
  %s17 = inlined_call_operand.hbm [shape: f32[16,128], index: 17, kind: output, shape index: {3}]
  %18 = xla_tuple %s14, %s15, %s16, %s17
  %s19 = sld [smem:[#allocation0]]
  $region133: #{prior_vae_forward.1} parent=0
    _
  %s21 = ssub.s32 1, %s19
  %s22 = scalar_select 0, %s21, %s19
  $region1: #{prior_vae_forward.1} parent=0
    #allocation2 [shape = 'u8[32768]{0}', space=vmem, size = 0x8000, scoped, tag = 'input window, operand 4, single buffered']
    #allocation3 [shape = 's32[2]{0}', space=sflag, size = 0x8, scoped, tag = 'scoped memory for prior_vae_forward.1']
    #allocation4 [shape = 's32[2]{0}', space=sflag, size = 0x8, scoped, tag = 'scoped memory for prior_vae_forward.1']
    #allocation5 [shape = 'u8[65536]{0}', space=vmem, size = 0x10000, scoped, tag = 'input window, operand 6, single buffered']
    #allocation6 [shape = 's32[1]{0}', space=sflag, size = 0x4, scoped, tag = 'scoped memory for prior_vae_forward.1']
    #allocation7 [shape = 'u8[32768]{0}', space=vmem, size = 0x8000, scoped, tag = 'input window, operand 8, single buffered']
    #allocation8 [shape = 'u8[32768]{0}', space=vmem, size = 0x8000, scoped, tag = 'input window, operand 10, single buffered']
    #allocation9 [shape = 's32[1]{0}', space=sflag, size = 0x4, scoped, tag = 'scoped memory for prior_vae_forward.1']
    #allocation10 [shape = 'u8[32768]{0}', space=vmem, size = 0x8000, scoped, tag = 'input window, operand 12, single buffered']
    #allocation11 [shape = 'u8[8192]{0}', space=vmem, size = 0x2000, scoped, tag = 'output window, operand 0']
    #allocation12 [shape = 'u8[8192]{0}', space=vmem, size = 0x2000, scoped, tag = 'output window, operand 1']
    #allocation13 [shape = 's32[2]{0}', space=sflag, size = 0x8, scoped, tag = 'scoped memory for prior_vae_forward.1']
    #allocation14 [shape = 'u8[8192]{0}', space=vmem, size = 0x2000, scoped, tag = 'output window, operand 2']
    #allocation15 [shape = 'u8[8192]{0}', space=vmem, size = 0x2000, scoped, tag = 'output window, operand 3']
    #allocation16 [shape = 's32[2]{0}', space=sflag, size = 0x8, scoped, tag = 'scoped memory for prior_vae_forward.1']
    %23 = vsyncpa [#allocation3], 0
    %24 = vsyncpa [#allocation6], 0
    %25 = vsyncpa [#allocation9], 0
    %26 = vsyncpa [#allocation4], 0
    %s27 = scalar_lea.sflag [#allocation4], 1
    %28 = vsyncpa %s27, 0
    %29 = vsyncpa [#allocation13], 0
    %s30 = scalar_lea.sflag [#allocation13], 1
    %31 = vsyncpa %s30, 0
    %32 = vsyncpa [#allocation16], 0
    %s33 = scalar_lea.sflag [#allocation16], 1
    %34 = vsyncpa %s33, 0
    loop: start=0, step=1, limit=4
    $region2: #{prior_vae_forward.1} parent=1 // loop_pre_header
      _
    $region3: #{prior_vae_forward.1} parent=1 // loop_header
      %s36 = sphi 0, %s40
      %p37 = scmp.ge.s32.totalorder %s36, 4
      %s46 = sphi 0, %s48
      %s49 = sphi 0, %s46
      %s50 = sphi 0, %s49
      %s66 = sphi 0, %s50
      %s72 = sphi 0, %s74
      %s75 = sphi 0, %s72
      %s76 = sphi 0, %s75
      %s92 = sphi 0, %s76
      %s96 = sphi 0, %s96
      %s98 = sphi 0, %s96
      %s99 = sphi 0, %s98
      %s113 = sphi 0, %s99
      %s117 = sphi 0, %s117
      %s119 = sphi 0, %s117
      %s120 = sphi 0, %s119
      %s134 = sphi 0, %s120
      %s138 = sphi 0, %s138
      %s140 = sphi 0, %s138
      %s141 = sphi 0, %s140
      %s155 = sphi 0, %s141
      %s159 = sphi 0, %s159
      %s161 = sphi 0, %s159
      %s162 = sphi 0, %s161
      %s176 = sphi 0, %s162
      %s180 = sphi 0, %s180
      %s182 = sphi 0, %s180
      %s183 = sphi 0, %s182
      %s197 = sphi 0, %s183
      %s201 = sphi 0, %s201
      %s203 = sphi 0, %s201
      %s204 = sphi 0, %s203
      %s218 = sphi 0, %s204
      %s222 = sphi 0, %s222
      %s224 = sphi 0, %s222
      %s225 = sphi 0, %s224
      %s239 = sphi 0, %s225
      %s243 = sphi 0, %s243
      %s245 = sphi 0, %s243
      %s246 = sphi 0, %s245
      %s260 = sphi 0, %s246
      %s264 = sphi 0, %s264
      %s266 = sphi 0, %s264
      %s267 = sphi 0, %s266
      %s281 = sphi 0, %s267
      %s285 = sphi 0, %s285
      %s287 = sphi 0, %s285
      %s288 = sphi 0, %s287
      %s302 = sphi 0, %s288
      %s306 = sphi 0, %s306
      %s308 = sphi 0, %s306
      %s309 = sphi 0, %s308
      %s323 = sphi 0, %s309
      %s327 = sphi 0, %s327
      %s329 = sphi 0, %s327
      %s330 = sphi 0, %s329
      %s344 = sphi 0, %s330
      %s350 = sphi 0, %s352
      %s353 = sphi 0, %s350
      %s354 = sphi 0, %s353
      %s370 = sphi 0, %s354
      %s376 = sphi 0, %s378
      %s379 = sphi 0, %s376
      %s380 = sphi 0, %s379
      %s396 = sphi 0, %s380
      %s402 = sphi 0, %s404
      %s405 = sphi 0, %s402
      %s406 = sphi 0, %s405
      %s422 = sphi 0, %s406
      %s428 = sphi 0, %s430
      %s431 = sphi 0, %s428
      %s432 = sphi 0, %s431
      %s448 = sphi 0, %s432
    $region4: #{prior_vae_forward.1} parent=1 // loop_header_branch
      %39 = sbr.rel (%p37) target = $region8
    $region5: #{prior_vae_forward.1} parent=1 // loop_body
      %s41 = ssub.s32 %s36, 1
      %s42 = ssub.s32 %s36, 2
      %s43 = sadd.s32 %s36, 1
      %s44 = ssub.s32 %s36, %s43
      %p45 = scmp.eq.s32.totalorder %s44, 0
      %s47 = sadd.s32 %s46, 1
      %s48 = scalar_select %p45, %s46, %s47
      %p51 = pneg %p45
      %p52 = scmp.eq.s32.totalorder %s36, 1
      %p53 = por %p51, %p52
      %p54 = scmp.ne.s32.totalorder %s46, %s49
      %p55 = scmp.eq.s32.totalorder %s36, 0
      %p56 = por %p54, %p55
      %p57 = scmp.ne.s32.totalorder %s46, %s49
      %p58 = scmp.eq.s32.totalorder %s41, 1
      %p59 = por %p57, %p58
      %p60 = scmp.ne.s32.totalorder %s49, %s50
      %p61 = scmp.eq.s32.totalorder %s41, 0
      %p62 = por %p60, %p61
      %p63 = scmp.ne.s32.totalorder %s49, %s50
      %p64 = scmp.eq.s32.totalorder %s42, 1
      %p65 = por %p63, %p64
      %p67 = scmp.ne.s32.totalorder %s50, %s66
      %p68 = scmp.eq.s32.totalorder %s42, 0
      %p69 = por %p67, %p68
      %s70 = ssub.s32 %s36, %s43
      %p71 = scmp.eq.s32.totalorder %s70, 0
      %s73 = sadd.s32 %s72, 1
      %s74 = scalar_select %p71, %s72, %s73
      %p77 = pneg %p71
      %p78 = scmp.eq.s32.totalorder %s36, 1
      %p79 = por %p77, %p78
      %p80 = scmp.ne.s32.totalorder %s72, %s75
      %p81 = scmp.eq.s32.totalorder %s36, 0
      %p82 = por %p80, %p81
      %p83 = scmp.ne.s32.totalorder %s72, %s75
      %p84 = scmp.eq.s32.totalorder %s41, 1
      %p85 = por %p83, %p84
      %p86 = scmp.ne.s32.totalorder %s75, %s76
      %p87 = scmp.eq.s32.totalorder %s41, 0
      %p88 = por %p86, %p87
      %p89 = scmp.ne.s32.totalorder %s75, %s76
      %p90 = scmp.eq.s32.totalorder %s42, 1
      %p91 = por %p89, %p90
      %p93 = scmp.ne.s32.totalorder %s76, %s92
      %p94 = scmp.eq.s32.totalorder %s42, 0
      %p95 = por %p93, %p94
      %s97 = sadd.s32 %s96, 1
      %p100 = scmp.eq.s32.totalorder %s36, 1
      %p101 = scmp.ne.s32.totalorder %s96, %s98
      %p102 = scmp.eq.s32.totalorder %s36, 0
      %p103 = por %p101, %p102
      %p104 = scmp.ne.s32.totalorder %s96, %s98
      %p105 = scmp.eq.s32.totalorder %s41, 1
      %p106 = por %p104, %p105
      %p107 = scmp.ne.s32.totalorder %s98, %s99
      %p108 = scmp.eq.s32.totalorder %s41, 0
      %p109 = por %p107, %p108
      %p110 = scmp.ne.s32.totalorder %s98, %s99
      %p111 = scmp.eq.s32.totalorder %s42, 1
      %p112 = por %p110, %p111
      %p114 = scmp.ne.s32.totalorder %s99, %s113
      %p115 = scmp.eq.s32.totalorder %s42, 0
      %p116 = por %p114, %p115
      %s118 = sadd.s32 %s117, 1
      %p121 = scmp.eq.s32.totalorder %s36, 1
      %p122 = scmp.ne.s32.totalorder %s117, %s119
      %p123 = scmp.eq.s32.totalorder %s36, 0
      %p124 = por %p122, %p123
      %p125 = scmp.ne.s32.totalorder %s117, %s119
      %p126 = scmp.eq.s32.totalorder %s41, 1
      %p127 = por %p125, %p126
      %p128 = scmp.ne.s32.totalorder %s119, %s120
      %p129 = scmp.eq.s32.totalorder %s41, 0
      %p130 = por %p128, %p129
      %p131 = scmp.ne.s32.totalorder %s119, %s120
      %p132 = scmp.eq.s32.totalorder %s42, 1
      %p133 = por %p131, %p132
      %p135 = scmp.ne.s32.totalorder %s120, %s134
      %p136 = scmp.eq.s32.totalorder %s42, 0
      %p137 = por %p135, %p136
      %s139 = sadd.s32 %s138, 1
      %p142 = scmp.eq.s32.totalorder %s36, 1
      %p143 = scmp.ne.s32.totalorder %s138, %s140
      %p144 = scmp.eq.s32.totalorder %s36, 0
      %p145 = por %p143, %p144
      %p146 = scmp.ne.s32.totalorder %s138, %s140
      %p147 = scmp.eq.s32.totalorder %s41, 1
      %p148 = por %p146, %p147
      %p149 = scmp.ne.s32.totalorder %s140, %s141
      %p150 = scmp.eq.s32.totalorder %s41, 0
      %p151 = por %p149, %p150
      %p152 = scmp.ne.s32.totalorder %s140, %s141
      %p153 = scmp.eq.s32.totalorder %s42, 1
      %p154 = por %p152, %p153
      %p156 = scmp.ne.s32.totalorder %s141, %s155
      %p157 = scmp.eq.s32.totalorder %s42, 0
      %p158 = por %p156, %p157
      %s160 = sadd.s32 %s159, 1
      %p163 = scmp.eq.s32.totalorder %s36, 1
      %p164 = scmp.ne.s32.totalorder %s159, %s161
      %p165 = scmp.eq.s32.totalorder %s36, 0
      %p166 = por %p164, %p165
      %p167 = scmp.ne.s32.totalorder %s159, %s161
      %p168 = scmp.eq.s32.totalorder %s41, 1
      %p169 = por %p167, %p168
      %p170 = scmp.ne.s32.totalorder %s161, %s162
      %p171 = scmp.eq.s32.totalorder %s41, 0
      %p172 = por %p170, %p171
      %p173 = scmp.ne.s32.totalorder %s161, %s162
      %p174 = scmp.eq.s32.totalorder %s42, 1
      %p175 = por %p173, %p174
      %p177 = scmp.ne.s32.totalorder %s162, %s176
      %p178 = scmp.eq.s32.totalorder %s42, 0
      %p179 = por %p177, %p178
      %s181 = sadd.s32 %s180, 1
      %p184 = scmp.eq.s32.totalorder %s36, 1
      %p185 = scmp.ne.s32.totalorder %s180, %s182
      %p186 = scmp.eq.s32.totalorder %s36, 0
      %p187 = por %p185, %p186
      %p188 = scmp.ne.s32.totalorder %s180, %s182
      %p189 = scmp.eq.s32.totalorder %s41, 1
      %p190 = por %p188, %p189
      %p191 = scmp.ne.s32.totalorder %s182, %s183
      %p192 = scmp.eq.s32.totalorder %s41, 0
      %p193 = por %p191, %p192
      %p194 = scmp.ne.s32.totalorder %s182, %s183
      %p195 = scmp.eq.s32.totalorder %s42, 1
      %p196 = por %p194, %p195
      %p198 = scmp.ne.s32.totalorder %s183, %s197
      %p199 = scmp.eq.s32.totalorder %s42, 0
      %p200 = por %p198, %p199
      %s202 = sadd.s32 %s201, 1
      %p205 = scmp.eq.s32.totalorder %s36, 1
      %p206 = scmp.ne.s32.totalorder %s201, %s203
      %p207 = scmp.eq.s32.totalorder %s36, 0
      %p208 = por %p206, %p207
      %p209 = scmp.ne.s32.totalorder %s201, %s203
      %p210 = scmp.eq.s32.totalorder %s41, 1
      %p211 = por %p209, %p210
      %p212 = scmp.ne.s32.totalorder %s203, %s204
      %p213 = scmp.eq.s32.totalorder %s41, 0
      %p214 = por %p212, %p213
      %p215 = scmp.ne.s32.totalorder %s203, %s204
      %p216 = scmp.eq.s32.totalorder %s42, 1
      %p217 = por %p215, %p216
      %p219 = scmp.ne.s32.totalorder %s204, %s218
      %p220 = scmp.eq.s32.totalorder %s42, 0
      %p221 = por %p219, %p220
      %s223 = sadd.s32 %s222, 1
      %p226 = scmp.eq.s32.totalorder %s36, 1
      %p227 = scmp.ne.s32.totalorder %s222, %s224
      %p228 = scmp.eq.s32.totalorder %s36, 0
      %p229 = por %p227, %p228
      %p230 = scmp.ne.s32.totalorder %s222, %s224
      %p231 = scmp.eq.s32.totalorder %s41, 1
      %p232 = por %p230, %p231
      %p233 = scmp.ne.s32.totalorder %s224, %s225
      %p234 = scmp.eq.s32.totalorder %s41, 0
      %p235 = por %p233, %p234
      %p236 = scmp.ne.s32.totalorder %s224, %s225
      %p237 = scmp.eq.s32.totalorder %s42, 1
      %p238 = por %p236, %p237
      %p240 = scmp.ne.s32.totalorder %s225, %s239
      %p241 = scmp.eq.s32.totalorder %s42, 0
      %p242 = por %p240, %p241
      %s244 = sadd.s32 %s243, 1
      %p247 = scmp.eq.s32.totalorder %s36, 1
      %p248 = scmp.ne.s32.totalorder %s243, %s245
      %p249 = scmp.eq.s32.totalorder %s36, 0
      %p250 = por %p248, %p249
      %p251 = scmp.ne.s32.totalorder %s243, %s245
      %p252 = scmp.eq.s32.totalorder %s41, 1
      %p253 = por %p251, %p252
      %p254 = scmp.ne.s32.totalorder %s245, %s246
      %p255 = scmp.eq.s32.totalorder %s41, 0
      %p256 = por %p254, %p255
      %p257 = scmp.ne.s32.totalorder %s245, %s246
      %p258 = scmp.eq.s32.totalorder %s42, 1
      %p259 = por %p257, %p258
      %p261 = scmp.ne.s32.totalorder %s246, %s260
      %p262 = scmp.eq.s32.totalorder %s42, 0
      %p263 = por %p261, %p262
      %s265 = sadd.s32 %s264, 1
      %p268 = scmp.eq.s32.totalorder %s36, 1
      %p269 = scmp.ne.s32.totalorder %s264, %s266
      %p270 = scmp.eq.s32.totalorder %s36, 0
      %p271 = por %p269, %p270
      %p272 = scmp.ne.s32.totalorder %s264, %s266
      %p273 = scmp.eq.s32.totalorder %s41, 1
      %p274 = por %p272, %p273
      %p275 = scmp.ne.s32.totalorder %s266, %s267
      %p276 = scmp.eq.s32.totalorder %s41, 0
      %p277 = por %p275, %p276
      %p278 = scmp.ne.s32.totalorder %s266, %s267
      %p279 = scmp.eq.s32.totalorder %s42, 1
      %p280 = por %p278, %p279
      %p282 = scmp.ne.s32.totalorder %s267, %s281
      %p283 = scmp.eq.s32.totalorder %s42, 0
      %p284 = por %p282, %p283
      %s286 = sadd.s32 %s285, 1
      %p289 = scmp.eq.s32.totalorder %s36, 1
      %p290 = scmp.ne.s32.totalorder %s285, %s287
      %p291 = scmp.eq.s32.totalorder %s36, 0
      %p292 = por %p290, %p291
      %p293 = scmp.ne.s32.totalorder %s285, %s287
      %p294 = scmp.eq.s32.totalorder %s41, 1
      %p295 = por %p293, %p294
      %p296 = scmp.ne.s32.totalorder %s287, %s288
      %p297 = scmp.eq.s32.totalorder %s41, 0
      %p298 = por %p296, %p297
      %p299 = scmp.ne.s32.totalorder %s287, %s288
      %p300 = scmp.eq.s32.totalorder %s42, 1
      %p301 = por %p299, %p300
      %p303 = scmp.ne.s32.totalorder %s288, %s302
      %p304 = scmp.eq.s32.totalorder %s42, 0
      %p305 = por %p303, %p304
      %s307 = sadd.s32 %s306, 1
      %p310 = scmp.eq.s32.totalorder %s36, 1
      %p311 = scmp.ne.s32.totalorder %s306, %s308
      %p312 = scmp.eq.s32.totalorder %s36, 0
      %p313 = por %p311, %p312
      %p314 = scmp.ne.s32.totalorder %s306, %s308
      %p315 = scmp.eq.s32.totalorder %s41, 1
      %p316 = por %p314, %p315
      %p317 = scmp.ne.s32.totalorder %s308, %s309
      %p318 = scmp.eq.s32.totalorder %s41, 0
      %p319 = por %p317, %p318
      %p320 = scmp.ne.s32.totalorder %s308, %s309
      %p321 = scmp.eq.s32.totalorder %s42, 1
      %p322 = por %p320, %p321
      %p324 = scmp.ne.s32.totalorder %s309, %s323
      %p325 = scmp.eq.s32.totalorder %s42, 0
      %p326 = por %p324, %p325
      %s328 = sadd.s32 %s327, 1
      %p331 = scmp.eq.s32.totalorder %s36, 1
      %p332 = scmp.ne.s32.totalorder %s327, %s329
      %p333 = scmp.eq.s32.totalorder %s36, 0
      %p334 = por %p332, %p333
      %p335 = scmp.ne.s32.totalorder %s327, %s329
      %p336 = scmp.eq.s32.totalorder %s41, 1
      %p337 = por %p335, %p336
      %p338 = scmp.ne.s32.totalorder %s329, %s330
      %p339 = scmp.eq.s32.totalorder %s41, 0
      %p340 = por %p338, %p339
      %p341 = scmp.ne.s32.totalorder %s329, %s330
      %p342 = scmp.eq.s32.totalorder %s42, 1
      %p343 = por %p341, %p342
      %p345 = scmp.ne.s32.totalorder %s330, %s344
      %p346 = scmp.eq.s32.totalorder %s42, 0
      %p347 = por %p345, %p346
      %s348 = ssub.s32 %s36, %s43
      %p349 = scmp.eq.s32.totalorder %s348, 0
      %s351 = sadd.s32 %s350, 1
      %s352 = scalar_select %p349, %s350, %s351
      %p355 = pneg %p349
      %p356 = scmp.eq.s32.totalorder %s36, 1
      %p357 = por %p355, %p356
      %p358 = scmp.ne.s32.totalorder %s350, %s353
      %p359 = scmp.eq.s32.totalorder %s36, 0
      %p360 = por %p358, %p359
      %p361 = scmp.ne.s32.totalorder %s350, %s353
      %p362 = scmp.eq.s32.totalorder %s41, 1
      %p363 = por %p361, %p362
      %p364 = scmp.ne.s32.totalorder %s353, %s354
      %p365 = scmp.eq.s32.totalorder %s41, 0
      %p366 = por %p364, %p365
      %p367 = scmp.ne.s32.totalorder %s353, %s354
      %p368 = scmp.eq.s32.totalorder %s42, 1
      %p369 = por %p367, %p368
      %p371 = scmp.ne.s32.totalorder %s354, %s370
      %p372 = scmp.eq.s32.totalorder %s42, 0
      %p373 = por %p371, %p372
      %s374 = ssub.s32 %s36, %s43
      %p375 = scmp.eq.s32.totalorder %s374, 0
      %s377 = sadd.s32 %s376, 1
      %s378 = scalar_select %p375, %s376, %s377
      %p381 = pneg %p375
      %p382 = scmp.eq.s32.totalorder %s36, 1
      %p383 = por %p381, %p382
      %p384 = scmp.ne.s32.totalorder %s376, %s379
      %p385 = scmp.eq.s32.totalorder %s36, 0
      %p386 = por %p384, %p385
      %p387 = scmp.ne.s32.totalorder %s376, %s379
      %p388 = scmp.eq.s32.totalorder %s41, 1
      %p389 = por %p387, %p388
      %p390 = scmp.ne.s32.totalorder %s379, %s380
      %p391 = scmp.eq.s32.totalorder %s41, 0
      %p392 = por %p390, %p391
      %p393 = scmp.ne.s32.totalorder %s379, %s380
      %p394 = scmp.eq.s32.totalorder %s42, 1
      %p395 = por %p393, %p394
      %p397 = scmp.ne.s32.totalorder %s380, %s396
      %p398 = scmp.eq.s32.totalorder %s42, 0
      %p399 = por %p397, %p398
      %s400 = ssub.s32 %s36, %s43
      %p401 = scmp.eq.s32.totalorder %s400, 0
      %s403 = sadd.s32 %s402, 1
      %s404 = scalar_select %p401, %s402, %s403
      %p407 = pneg %p401
      %p408 = scmp.eq.s32.totalorder %s36, 1
      %p409 = por %p407, %p408
      %p410 = scmp.ne.s32.totalorder %s402, %s405
      %p411 = scmp.eq.s32.totalorder %s36, 0
      %p412 = por %p410, %p411
      %p413 = scmp.ne.s32.totalorder %s402, %s405
      %p414 = scmp.eq.s32.totalorder %s41, 1
      %p415 = por %p413, %p414
      %p416 = scmp.ne.s32.totalorder %s405, %s406
      %p417 = scmp.eq.s32.totalorder %s41, 0
      %p418 = por %p416, %p417
      %p419 = scmp.ne.s32.totalorder %s405, %s406
      %p420 = scmp.eq.s32.totalorder %s42, 1
      %p421 = por %p419, %p420
      %p423 = scmp.ne.s32.totalorder %s406, %s422
      %p424 = scmp.eq.s32.totalorder %s42, 0
      %p425 = por %p423, %p424
      %s426 = ssub.s32 %s36, %s43
      %p427 = scmp.eq.s32.totalorder %s426, 0
      %s429 = sadd.s32 %s428, 1
      %s430 = scalar_select %p427, %s428, %s429
      %p433 = pneg %p427
      %p434 = scmp.eq.s32.totalorder %s36, 1
      %p435 = por %p433, %p434
      %p436 = scmp.ne.s32.totalorder %s428, %s431
      %p437 = scmp.eq.s32.totalorder %s36, 0
      %p438 = por %p436, %p437
      %p439 = scmp.ne.s32.totalorder %s428, %s431
      %p440 = scmp.eq.s32.totalorder %s41, 1
      %p441 = por %p439, %p440
      %p442 = scmp.ne.s32.totalorder %s431, %s432
      %p443 = scmp.eq.s32.totalorder %s41, 0
      %p444 = por %p442, %p443
      %p445 = scmp.ne.s32.totalorder %s431, %s432
      %p446 = scmp.eq.s32.totalorder %s42, 1
      %p447 = por %p445, %p446
      %p449 = scmp.ne.s32.totalorder %s432, %s448
      %p450 = scmp.eq.s32.totalorder %s42, 0
      %p451 = por %p449, %p450
      %p452 = scmp.le.s32.totalorder 1, %s36
      %p453 = scmp.lt.s32.totalorder %s36, 3
      %p454 = pnand %p452, %p453
      %p455 = pneg %p454
      // Predicated region
      $region9: #{prior_vae_forward.1} parent=5 // pred_check
        _
      $region10: #{prior_vae_forward.1} parent=5 // pred_check_branch
        %457 = sbr.rel (%p454) target = $region12
      $region11: #{prior_vae_forward.1} parent=5 // pred_region
        %s458 = ssub.s32 %s36, 1
        // Predicated region
        $region13: #{prior_vae_forward.1} parent=11 // pred_check
          %p459 = pneg %p109
        $region14: #{prior_vae_forward.1} parent=11 // pred_check_branch
          %461 = sbr.rel (%p459) target = $region16
        $region15: #{prior_vae_forward.1} parent=11 // pred_region
          _
        $region16: #{prior_vae_forward.1} parent=11 // pred_fallthru
          _
        // Predicated region
        $region17: #{prior_vae_forward.1} parent=11 // pred_check
          %p462 = pneg %p130
        $region18: #{prior_vae_forward.1} parent=11 // pred_check_branch
          %464 = sbr.rel (%p462) target = $region20
        $region19: #{prior_vae_forward.1} parent=11 // pred_region
          _
        $region20: #{prior_vae_forward.1} parent=11 // pred_fallthru
          _
        // Predicated region
        $region21: #{prior_vae_forward.1} parent=11 // pred_check
          %p465 = pneg %p151
        $region22: #{prior_vae_forward.1} parent=11 // pred_check_branch
          %467 = sbr.rel (%p465) target = $region24
        $region23: #{prior_vae_forward.1} parent=11 // pred_region
          %s469 = ssub.s32 1024, 1024
          %470 = vsyncadd [#allocation3], %s469
          %s471 = sshll.u32 [#allocation2], 4
          %s472 = int_to_ptr.vmem [resolvable:$true] %s471
          %477 = dma.hbm_to_vmem [thread:$0]  %s4, 1024, %s472, [#allocation3], 64, 64, 4
        $region24: #{prior_vae_forward.1} parent=11 // pred_fallthru
          _
        // Predicated region
        $region25: #{prior_vae_forward.1} parent=11 // pred_check
          %p478 = pneg %p172
        $region26: #{prior_vae_forward.1} parent=11 // pred_check_branch
          %480 = sbr.rel (%p478) target = $region28
        $region27: #{prior_vae_forward.1} parent=11 // pred_region
          _
        $region28: #{prior_vae_forward.1} parent=11 // pred_fallthru
          _
        // Predicated region
        $region29: #{prior_vae_forward.1} parent=11 // pred_check
          %p481 = pneg %p193
        $region30: #{prior_vae_forward.1} parent=11 // pred_check_branch
          %483 = sbr.rel (%p481) target = $region32
        $region31: #{prior_vae_forward.1} parent=11 // pred_region
          %s485 = ssub.s32 2048, 2048
          %486 = vsyncadd [#allocation6], %s485
          %s487 = sshll.u32 [#allocation5], 4
          %s488 = int_to_ptr.vmem [resolvable:$true] %s487
          %493 = dma.hbm_to_vmem [thread:$0]  %s6, 2048, %s488, [#allocation6], 128, 128, 8
        $region32: #{prior_vae_forward.1} parent=11 // pred_fallthru
          _
        // Predicated region
        $region33: #{prior_vae_forward.1} parent=11 // pred_check
          %p494 = pneg %p214
        $region34: #{prior_vae_forward.1} parent=11 // pred_check_branch
          %496 = sbr.rel (%p494) target = $region36
        $region35: #{prior_vae_forward.1} parent=11 // pred_region
          _
        $region36: #{prior_vae_forward.1} parent=11 // pred_fallthru
          _
        // Predicated region
        $region37: #{prior_vae_forward.1} parent=11 // pred_check
          %p497 = pneg %p235
        $region38: #{prior_vae_forward.1} parent=11 // pred_check_branch
          %499 = sbr.rel (%p497) target = $region40
        $region39: #{prior_vae_forward.1} parent=11 // pred_region
          %s501 = ssub.s32 1024, 1024
          %502 = vsyncadd [#allocation6], %s501
          %s503 = sshll.u32 [#allocation7], 4
          %s504 = int_to_ptr.vmem [resolvable:$true] %s503
          %509 = dma.hbm_to_vmem [thread:$0]  %s8, 1024, %s504, [#allocation6], 64, 64, 4
        $region40: #{prior_vae_forward.1} parent=11 // pred_fallthru
          _
        // Predicated region
        $region41: #{prior_vae_forward.1} parent=11 // pred_check
          %p510 = pneg %p256
        $region42: #{prior_vae_forward.1} parent=11 // pred_check_branch
          %512 = sbr.rel (%p510) target = $region44
        $region43: #{prior_vae_forward.1} parent=11 // pred_region
          _
        $region44: #{prior_vae_forward.1} parent=11 // pred_fallthru
          _
        // Predicated region
        $region45: #{prior_vae_forward.1} parent=11 // pred_check
          %p513 = pneg %p277
        $region46: #{prior_vae_forward.1} parent=11 // pred_check_branch
          %515 = sbr.rel (%p513) target = $region48
        $region47: #{prior_vae_forward.1} parent=11 // pred_region
          %s517 = ssub.s32 1024, 1024
          %518 = vsyncadd [#allocation9], %s517
          %s519 = sshll.u32 [#allocation8], 4
          %s520 = int_to_ptr.vmem [resolvable:$true] %s519
          %525 = dma.hbm_to_vmem [thread:$0]  %s10, 1024, %s520, [#allocation9], 64, 64, 4
        $region48: #{prior_vae_forward.1} parent=11 // pred_fallthru
          _
        // Predicated region
        $region49: #{prior_vae_forward.1} parent=11 // pred_check
          %p526 = pneg %p298
        $region50: #{prior_vae_forward.1} parent=11 // pred_check_branch
          %528 = sbr.rel (%p526) target = $region52
        $region51: #{prior_vae_forward.1} parent=11 // pred_region
          _
        $region52: #{prior_vae_forward.1} parent=11 // pred_fallthru
          _
        // Predicated region
        $region53: #{prior_vae_forward.1} parent=11 // pred_check
          %p529 = pneg %p319
        $region54: #{prior_vae_forward.1} parent=11 // pred_check_branch
          %531 = sbr.rel (%p529) target = $region56
        $region55: #{prior_vae_forward.1} parent=11 // pred_region
          %s533 = ssub.s32 1024, 1024
          %534 = vsyncadd [#allocation9], %s533
          %s535 = sshll.u32 [#allocation10], 4
          %s536 = int_to_ptr.vmem [resolvable:$true] %s535
          %541 = dma.hbm_to_vmem [thread:$0]  %s12, 1024, %s536, [#allocation9], 64, 64, 4
        $region56: #{prior_vae_forward.1} parent=11 // pred_fallthru
          _
        // Predicated region
        $region57: #{prior_vae_forward.1} parent=11 // pred_check
          %p542 = pneg %p340
        $region58: #{prior_vae_forward.1} parent=11 // pred_check_branch
          %544 = sbr.rel (%p542) target = $region60
        $region59: #{prior_vae_forward.1} parent=11 // pred_region
          _
        $region60: #{prior_vae_forward.1} parent=11 // pred_fallthru
          _
      $region12: #{prior_vae_forward.1} parent=5 // pred_fallthru
        _
      %p545 = scmp.lt.s32.totalorder %s36, 2
      // Predicated region
      $region61: #{prior_vae_forward.1} parent=5 // pred_check
        %p546 = pneg %p545
      $region62: #{prior_vae_forward.1} parent=5 // pred_check_branch
        %548 = sbr.rel (%p546) target = $region64
      $region63: #{prior_vae_forward.1} parent=5 // pred_region
        // Predicated region
        $region65: #{prior_vae_forward.1} parent=63 // pred_check
          %p549 = pneg %p56
        $region66: #{prior_vae_forward.1} parent=63 // pred_check_branch
          %551 = sbr.rel (%p549) target = $region68
        $region67: #{prior_vae_forward.1} parent=63 // pred_region
          %p552 = scmp.lt.s32.totalorder %s36, 1
          %s553 = scalar_select %p552, %s36, 1
          %s554 = smul.addr %s553, 4
          %s555 = scalar_lea.vmem %s0, %s554
        $region68: #{prior_vae_forward.1} parent=63 // pred_fallthru
          _
        // Predicated region
        $region69: #{prior_vae_forward.1} parent=63 // pred_check
          %p556 = pneg %p82
        $region70: #{prior_vae_forward.1} parent=63 // pred_check_branch
          %558 = sbr.rel (%p556) target = $region72
        $region71: #{prior_vae_forward.1} parent=63 // pred_region
          %p559 = scmp.lt.s32.totalorder %s36, 1
          %s560 = scalar_select %p559, %s36, 1
          %s561 = smul.addr %s560, 8
          %s562 = scalar_lea.vmem %s1, %s561
        $region72: #{prior_vae_forward.1} parent=63 // pred_fallthru
          _
      $region64: #{prior_vae_forward.1} parent=5 // pred_fallthru
        _
      %p563 = scmp.le.s32.totalorder 1, %s36
      %p564 = scmp.lt.s32.totalorder %s36, 3
      %p565 = pnand %p563, %p564
      %p566 = pneg %p565
      // Predicated region
      $region73: #{prior_vae_forward.1} parent=5 // pred_check
        _
      $region74: #{prior_vae_forward.1} parent=5 // pred_check_branch
        %568 = sbr.rel (%p565) target = $region76
      $region75: #{prior_vae_forward.1} parent=5 // pred_region
        %s569 = ssub.s32 %s36, 1
        // Predicated region
        $region77: #{prior_vae_forward.1} parent=75 // pred_check
          %p570 = pneg %p151
        $region78: #{prior_vae_forward.1} parent=75 // pred_check_branch
          %572 = sbr.rel (%p570) target = $region80
        $region79: #{prior_vae_forward.1} parent=75 // pred_region
          %573 = dma.done [#allocation3], 1024
        $region80: #{prior_vae_forward.1} parent=75 // pred_fallthru
          _
        // Predicated region
        $region81: #{prior_vae_forward.1} parent=75 // pred_check
          %p574 = pneg %p193
        $region82: #{prior_vae_forward.1} parent=75 // pred_check_branch
          %576 = sbr.rel (%p574) target = $region84
        $region83: #{prior_vae_forward.1} parent=75 // pred_region
          %577 = dma.done [#allocation6], 2048
        $region84: #{prior_vae_forward.1} parent=75 // pred_fallthru
          _
        // Predicated region
        $region85: #{prior_vae_forward.1} parent=75 // pred_check
          %p578 = pneg %p235
        $region86: #{prior_vae_forward.1} parent=75 // pred_check_branch
          %580 = sbr.rel (%p578) target = $region88
        $region87: #{prior_vae_forward.1} parent=75 // pred_region
          %581 = dma.done [#allocation6], 1024
        $region88: #{prior_vae_forward.1} parent=75 // pred_fallthru
          _
        // Predicated region
        $region89: #{prior_vae_forward.1} parent=75 // pred_check
          %p582 = pneg %p277
        $region90: #{prior_vae_forward.1} parent=75 // pred_check_branch
          %584 = sbr.rel (%p582) target = $region92
        $region91: #{prior_vae_forward.1} parent=75 // pred_region
          %585 = dma.done [#allocation9], 1024
        $region92: #{prior_vae_forward.1} parent=75 // pred_fallthru
          _
        // Predicated region
        $region93: #{prior_vae_forward.1} parent=75 // pred_check
          %p586 = pneg %p319
        $region94: #{prior_vae_forward.1} parent=75 // pred_check_branch
          %588 = sbr.rel (%p586) target = $region96
        $region95: #{prior_vae_forward.1} parent=75 // pred_region
          %589 = dma.done [#allocation9], 1024
        $region96: #{prior_vae_forward.1} parent=75 // pred_fallthru
          _
        %p590 = scmp.lt.s32.totalorder %s41, 1
        %s591 = scalar_select %p590, %s41, 1
        %s592 = smul.addr %s591, 4
        %s593 = scalar_lea.vmem %s0, %s592
        %p594 = pneg %p62
        %p595 = pneg %p59
        %p596 = scmp.lt.s32.totalorder %s41, 1
        %s597 = scalar_select %p596, %s41, 1
        %s598 = smul.addr %s597, 8
        %s599 = scalar_lea.vmem %s1, %s598
        %p600 = pneg %p88
        %p601 = pneg %p85
        %p602 = pneg %p109
        %p603 = pneg %p106
        %p604 = pneg %p130
        %p605 = pneg %p127
        %p606 = pneg %p151
        %p607 = pneg %p148
        %p608 = pneg %p172
        %p609 = pneg %p169
        %p610 = pneg %p193
        %p611 = pneg %p190
        %p612 = pneg %p214
        %p613 = pneg %p211
        %p614 = pneg %p235
        %p615 = pneg %p232
        %p616 = pneg %p256
        %p617 = pneg %p253
        %p618 = pneg %p277
        %p619 = pneg %p274
        %p620 = pneg %p298
        %p621 = pneg %p295
        %p622 = pneg %p319
        %p623 = pneg %p316
        %p624 = pneg %p340
        %p625 = pneg %p337
        %p626 = pneg %p366
        %p627 = pneg %p363
        %s628 = sand.u32 %s353, 1
        %s629 = scalar_lea.sflag [#allocation4], %s628
        %s630 = sand.u32 %s353, 1
        %s631 = smul.addr %s630, 8
        %s632 = scalar_lea.vmem [#allocation11], %s631
        %p633 = pneg %p392
        %p634 = pneg %p389
        %s635 = sand.u32 %s41, 1
        %s636 = scalar_lea.sflag [#allocation13], %s635
        %s637 = sand.u32 %s379, 1
        %s638 = smul.addr %s637, 8
        %s639 = scalar_lea.vmem [#allocation12], %s638
        %p640 = pneg %p418
        %p641 = pneg %p415
        %s642 = sand.u32 %s41, 1
        %s643 = scalar_lea.sflag [#allocation13], %s642
        %s644 = sand.u32 %s405, 1
        %s645 = smul.addr %s644, 8
        %s646 = scalar_lea.vmem [#allocation14], %s645
        %p647 = pneg %p444
        %p648 = pneg %p441
        %s649 = sand.u32 %s431, 1
        %s650 = scalar_lea.sflag [#allocation16], %s649
        %s651 = sand.u32 %s431, 1
        %s652 = smul.addr %s651, 8
        %s653 = scalar_lea.vmem [#allocation15], %s652
        %p654 = scmp.lt.s32.totalorder %s41, 1
        %s655 = scalar_select %p654, %s41, 1
        %s656 = smul.addr %s655, 4
        %s657 = scalar_lea.vmem %s0, %s656
        %p658 = scmp.lt.s32.totalorder %s41, 1
        %s659 = scalar_select %p658, %s41, 1
        %s660 = smul.addr %s659, 8
        %s661 = scalar_lea.vmem %s1, %s660
        %v663 = vld [vmem:[%s657] sm:$0xf]
        %v664 = vld [vmem:[%s2] sm:$0xf]
        %v665 = vld [vmem:[%s2 + $0x4] sm:$0xf]
        %v666 = vld [vmem:[%s2 + $0x8] sm:$0xf]
        %v667 = vld [vmem:[%s2 + $0xc] sm:$0xf]
        %v668 = vld [vmem:[%s2 + $0x10] sm:$0xf]
        %v669 = vld [vmem:[%s2 + $0x14] sm:$0xf]
        %v670 = vld [vmem:[%s2 + $0x18] sm:$0xf]
        %v671 = vld [vmem:[%s2 + $0x1c] sm:$0xf]
        %v672 = vld [vmem:[%s2 + $0x20] sm:$0xf]
        %v673 = vld [vmem:[%s2 + $0x24] sm:$0xf]
        %v674 = vld [vmem:[%s2 + $0x28] sm:$0xf]
        %v675 = vld [vmem:[%s2 + $0x2c] sm:$0xf]
        %v676 = vld [vmem:[%s2 + $0x30] sm:$0xf]
        %v677 = vld [vmem:[%s2 + $0x34] sm:$0xf]
        %v678 = vld [vmem:[%s2 + $0x38] sm:$0xf]
        %v679 = vld [vmem:[%s2 + $0x3c] sm:$0xf]
        %v680 = vld [vmem:[%s3] sm:$0x1]
        %v682 = vlaneseq
        %v683 = vshrl.u32 %v682, 7
        %v684 = vsub.s32 0, %v683
        %v685 = vrot.slane %v680, %v684
        %v703 = vunpack.c.l.b16 %v664
        %v704 = vunpack.c.l.b16 %v665
        %v705 = vunpack.c.l.b16 %v666
        %v706 = vunpack.c.l.b16 %v667
        %v707 = vunpack.c.l.b16 %v668
        %v708 = vunpack.c.l.b16 %v669
        %v709 = vunpack.c.l.b16 %v670
        %v710 = vunpack.c.l.b16 %v671
        %v711 = vunpack.c.l.b16 %v672
        %v712 = vunpack.c.l.b16 %v673
        %v713 = vunpack.c.l.b16 %v674
        %v714 = vunpack.c.l.b16 %v675
        %v715 = vunpack.c.l.b16 %v676
        %v716 = vunpack.c.l.b16 %v677
        %v717 = vunpack.c.l.b16 %v678
        %v718 = vunpack.c.l.b16 %v679
        %v719 = vpack.c.b16 %v704, %v703
        %v720 = vpack.c.b16 %v706, %v705
        %v721 = vpack.c.b16 %v708, %v707
        %v722 = vpack.c.b16 %v710, %v709
        %v723 = vpack.c.b16 %v712, %v711
        %v724 = vpack.c.b16 %v714, %v713
        %v725 = vpack.c.b16 %v716, %v715
        %v726 = vpack.c.b16 %v718, %v717
        %735 = vmatprep.subr.bf16.mxu0 0
        %736 = vmatpush1.bf16.msra.mxu0 %v719
        %737 = vmatprep.subr.bf16.mxu0 0
        %738 = vmatpush1.bf16.msra.mxu0 %v720
        %739 = vmatprep.subr.bf16.mxu0 0
        %740 = vmatpush1.bf16.msra.mxu0 %v721
        %741 = vmatprep.subr.bf16.mxu0 0
        %742 = vmatpush1.bf16.msra.mxu0 %v722
        %743 = vmatprep.subr.bf16.mxu0 0
        %744 = vmatpush1.bf16.msra.mxu0 %v723
        %745 = vmatprep.subr.bf16.mxu0 0
        %746 = vmatpush1.bf16.msra.mxu0 %v724
        %747 = vmatprep.subr.bf16.mxu0 0
        %748 = vmatpush1.bf16.msra.mxu0 %v725
        %749 = vmatprep.subr.bf16.mxu0 0
        %750 = vmatpush1.bf16.msra.mxu0 %v726
        %751 = vmatprep.subr.bf16.mxu0 0
        %752 = vmatpush1.bf16.msra.mxu0 0
        %753 = vmatprep.subr.bf16.mxu0 0
        %754 = vmatpush1.bf16.msra.mxu0 0
        %755 = vmatprep.subr.bf16.mxu0 0
        %756 = vmatpush1.bf16.msra.mxu0 0
        %757 = vmatprep.subr.bf16.mxu0 0
        %758 = vmatpush1.bf16.msra.mxu0 0
        %759 = vmatprep.subr.bf16.mxu0 0
        %760 = vmatpush1.bf16.msra.mxu0 0
        %761 = vmatprep.subr.bf16.mxu0 0
        %762 = vmatpush1.bf16.msra.mxu0 0
        %763 = vmatprep.subr.bf16.mxu0 0
        %764 = vmatpush1.bf16.msra.mxu0 0
        %765 = vmatprep.subr.bf16.mxu0 0
        %766 = vmatpush1.bf16.msra.mxu0 0
        %767 = vmatprep.mubr.bf16.mxu0 0
        %768 = vmatmul.mubr.bf16.gmra.mrb[0].mxu0 %v663
        %v769 = vpop.f32.mrb[0].mxu0
        %v770 = vadd.f32 %v685, %v769
        %v771 = vpop.f32.mrb[0].mxu0
        %v772 = vpop.f32.mrb[0].mxu0
        %v773 = vpop.f32.mrb[0].mxu0
        %774 = vdwg.mxu0
        %v775 = vmax.f32 %v770, 0.0
        %v776 = vpack.c.bf16 %v775, %v775
        %v777 = vld [vmem:[#allocation2] sm:$0xf]
        %v778 = vld [vmem:[#allocation2 + $0x4] sm:$0xf]
        %v779 = vld [vmem:[#allocation2 + $0x8] sm:$0xf]
        %v780 = vld [vmem:[#allocation2 + $0xc] sm:$0xf]
        %v781 = vld [vmem:[#allocation2 + $0x10] sm:$0xf]
        %v782 = vld [vmem:[#allocation2 + $0x14] sm:$0xf]
        %v783 = vld [vmem:[#allocation2 + $0x18] sm:$0xf]
        %v784 = vld [vmem:[#allocation2 + $0x1c] sm:$0xf]
        %v785 = vld [vmem:[#allocation2 + $0x20] sm:$0xf]
        %v786 = vld [vmem:[#allocation2 + $0x24] sm:$0xf]
        %v787 = vld [vmem:[#allocation2 + $0x28] sm:$0xf]
        %v788 = vld [vmem:[#allocation2 + $0x2c] sm:$0xf]
        %v789 = vld [vmem:[#allocation2 + $0x30] sm:$0xf]
        %v790 = vld [vmem:[#allocation2 + $0x34] sm:$0xf]
        %v791 = vld [vmem:[#allocation2 + $0x38] sm:$0xf]
        %v792 = vld [vmem:[#allocation2 + $0x3c] sm:$0xf]
        %v793 = vld [vmem:[%s5] sm:$0x1]
        %v795 = vlaneseq
        %v796 = vshrl.u32 %v795, 7
        %v797 = vsub.s32 0, %v796
        %v798 = vrot.slane %v793, %v797
        %v816 = vunpack.c.l.b16 %v777
        %v817 = vunpack.c.l.b16 %v778
        %v818 = vunpack.c.l.b16 %v779
        %v819 = vunpack.c.l.b16 %v780
        %v820 = vunpack.c.l.b16 %v781
        %v821 = vunpack.c.l.b16 %v782
        %v822 = vunpack.c.l.b16 %v783
        %v823 = vunpack.c.l.b16 %v784
        %v824 = vunpack.c.l.b16 %v785
        %v825 = vunpack.c.l.b16 %v786
        %v826 = vunpack.c.l.b16 %v787
        %v827 = vunpack.c.l.b16 %v788
        %v828 = vunpack.c.l.b16 %v789
        %v829 = vunpack.c.l.b16 %v790
        %v830 = vunpack.c.l.b16 %v791
        %v831 = vunpack.c.l.b16 %v792
        %v832 = vpack.c.b16 %v817, %v816
        %v833 = vpack.c.b16 %v819, %v818
        %v834 = vpack.c.b16 %v821, %v820
        %v835 = vpack.c.b16 %v823, %v822
        %v836 = vpack.c.b16 %v825, %v824
        %v837 = vpack.c.b16 %v827, %v826
        %v838 = vpack.c.b16 %v829, %v828
        %v839 = vpack.c.b16 %v831, %v830
        %848 = vmatprep.subr.bf16.mxu0 0
        %849 = vmatpush1.bf16.msra.mxu0 %v832
        %850 = vmatprep.subr.bf16.mxu0 0
        %851 = vmatpush1.bf16.msra.mxu0 %v833
        %852 = vmatprep.subr.bf16.mxu0 0
        %853 = vmatpush1.bf16.msra.mxu0 %v834
        %854 = vmatprep.subr.bf16.mxu0 0
        %855 = vmatpush1.bf16.msra.mxu0 %v835
        %856 = vmatprep.subr.bf16.mxu0 0
        %857 = vmatpush1.bf16.msra.mxu0 %v836
        %858 = vmatprep.subr.bf16.mxu0 0
        %859 = vmatpush1.bf16.msra.mxu0 %v837
        %860 = vmatprep.subr.bf16.mxu0 0
        %861 = vmatpush1.bf16.msra.mxu0 %v838
        %862 = vmatprep.subr.bf16.mxu0 0
        %863 = vmatpush1.bf16.msra.mxu0 %v839
        %864 = vmatprep.subr.bf16.mxu0 0
        %865 = vmatpush1.bf16.msra.mxu0 0
        %866 = vmatprep.subr.bf16.mxu0 0
        %867 = vmatpush1.bf16.msra.mxu0 0
        %868 = vmatprep.subr.bf16.mxu0 0
        %869 = vmatpush1.bf16.msra.mxu0 0
        %870 = vmatprep.subr.bf16.mxu0 0
        %871 = vmatpush1.bf16.msra.mxu0 0
        %872 = vmatprep.subr.bf16.mxu0 0
        %873 = vmatpush1.bf16.msra.mxu0 0
        %874 = vmatprep.subr.bf16.mxu0 0
        %875 = vmatpush1.bf16.msra.mxu0 0
        %876 = vmatprep.subr.bf16.mxu0 0
        %877 = vmatpush1.bf16.msra.mxu0 0
        %878 = vmatprep.subr.bf16.mxu0 0
        %879 = vmatpush1.bf16.msra.mxu0 0
        %880 = vmatprep.mubr.bf16.mxu0 0
        %881 = vmatmul.mubr.bf16.gmra.mrb[0].mxu0 %v776
        %v882 = vpop.f32.mrb[0].mxu0
        %v883 = vadd.f32 %v798, %v882
        %v884 = vpop.f32.mrb[0].mxu0
        %v885 = vpop.f32.mrb[0].mxu0
        %v886 = vpop.f32.mrb[0].mxu0
        %887 = vdwg.mxu0
        %v888 = vmax.f32 %v883, 0.0
        %v889 = vpack.c.bf16 %v888, %v888
        %v890 = vld [vmem:[#allocation5] sm:$0xff]
        %v891 = vld [vmem:[#allocation5 + $0x8] sm:$0xff]
        %v892 = vld [vmem:[#allocation5 + $0x10] sm:$0xff]
        %v893 = vld [vmem:[#allocation5 + $0x18] sm:$0xff]
        %v894 = vld [vmem:[#allocation5 + $0x20] sm:$0xff]
        %v895 = vld [vmem:[#allocation5 + $0x28] sm:$0xff]
        %v896 = vld [vmem:[#allocation5 + $0x30] sm:$0xff]
        %v897 = vld [vmem:[#allocation5 + $0x38] sm:$0xff]
        %v898 = vld [vmem:[#allocation5 + $0x40] sm:$0xff]
        %v899 = vld [vmem:[#allocation5 + $0x48] sm:$0xff]
        %v900 = vld [vmem:[#allocation5 + $0x50] sm:$0xff]
        %v901 = vld [vmem:[#allocation5 + $0x58] sm:$0xff]
        %v902 = vld [vmem:[#allocation5 + $0x60] sm:$0xff]
        %v903 = vld [vmem:[#allocation5 + $0x68] sm:$0xff]
        %v904 = vld [vmem:[#allocation5 + $0x70] sm:$0xff]
        %v905 = vld [vmem:[#allocation5 + $0x78] sm:$0xff]
        %v906 = vld [vmem:[%s7] sm:$0x3]
        %v908 = vlaneseq
        %v909 = vshrl.u32 %v908, 7
        %v910 = vsub.s32 0, %v909
        %v911 = vrot.slane %v906, %v910
        %v912 = vlaneseq
        %v913 = vshrl.u32 %v912, 7
        %v914 = vsub.s32 1, %v913
        %v915 = vrot.slane %v906, %v914
        %v934 = vunpack.c.l.b16 %v890
        %v935 = vunpack.c.h.b16 %v890
        %v936 = vunpack.c.l.b16 %v891
        %v937 = vunpack.c.h.b16 %v891
        %v938 = vunpack.c.l.b16 %v892
        %v939 = vunpack.c.h.b16 %v892
        %v940 = vunpack.c.l.b16 %v893
        %v941 = vunpack.c.h.b16 %v893
        %v942 = vunpack.c.l.b16 %v894
        %v943 = vunpack.c.h.b16 %v894
        %v944 = vunpack.c.l.b16 %v895
        %v945 = vunpack.c.h.b16 %v895
        %v946 = vunpack.c.l.b16 %v896
        %v947 = vunpack.c.h.b16 %v896
        %v948 = vunpack.c.l.b16 %v897
        %v949 = vunpack.c.h.b16 %v897
        %v950 = vunpack.c.l.b16 %v898
        %v951 = vunpack.c.h.b16 %v898
        %v952 = vunpack.c.l.b16 %v899
        %v953 = vunpack.c.h.b16 %v899
        %v954 = vunpack.c.l.b16 %v900
        %v955 = vunpack.c.h.b16 %v900
        %v956 = vunpack.c.l.b16 %v901
        %v957 = vunpack.c.h.b16 %v901
        %v958 = vunpack.c.l.b16 %v902
        %v959 = vunpack.c.h.b16 %v902
        %v960 = vunpack.c.l.b16 %v903
        %v961 = vunpack.c.h.b16 %v903
        %v962 = vunpack.c.l.b16 %v904
        %v963 = vunpack.c.h.b16 %v904
        %v964 = vunpack.c.l.b16 %v905
        %v965 = vunpack.c.h.b16 %v905
        %v966 = vpack.c.b16 %v936, %v934
        %v967 = vpack.c.b16 %v937, %v935
        %v968 = vpack.c.b16 %v940, %v938
        %v969 = vpack.c.b16 %v941, %v939
        %v970 = vpack.c.b16 %v944, %v942
        %v971 = vpack.c.b16 %v945, %v943
        %v972 = vpack.c.b16 %v948, %v946
        %v973 = vpack.c.b16 %v949, %v947
        %v974 = vpack.c.b16 %v952, %v950
        %v975 = vpack.c.b16 %v953, %v951
        %v976 = vpack.c.b16 %v956, %v954
        %v977 = vpack.c.b16 %v957, %v955
        %v978 = vpack.c.b16 %v960, %v958
        %v979 = vpack.c.b16 %v961, %v959
        %v980 = vpack.c.b16 %v964, %v962
        %v981 = vpack.c.b16 %v965, %v963
        %998 = vmatprep.subr.bf16.mxu0 %v967
        %999 = vmatpush1.bf16.msra.mxu0 %v966
        %1000 = vmatprep.subr.bf16.mxu0 %v969
        %1001 = vmatpush1.bf16.msra.mxu0 %v968
        %1002 = vmatprep.subr.bf16.mxu0 %v971
        %1003 = vmatpush1.bf16.msra.mxu0 %v970
        %1004 = vmatprep.subr.bf16.mxu0 %v973
        %1005 = vmatpush1.bf16.msra.mxu0 %v972
        %1006 = vmatprep.subr.bf16.mxu0 %v975
        %1007 = vmatpush1.bf16.msra.mxu0 %v974
        %1008 = vmatprep.subr.bf16.mxu0 %v977
        %1009 = vmatpush1.bf16.msra.mxu0 %v976
        %1010 = vmatprep.subr.bf16.mxu0 %v979
        %1011 = vmatpush1.bf16.msra.mxu0 %v978
        %1012 = vmatprep.subr.bf16.mxu0 %v981
        %1013 = vmatpush1.bf16.msra.mxu0 %v980
        %1014 = vmatprep.subr.bf16.mxu0 0
        %1015 = vmatpush1.bf16.msra.mxu0 0
        %1016 = vmatprep.subr.bf16.mxu0 0
        %1017 = vmatpush1.bf16.msra.mxu0 0
        %1018 = vmatprep.subr.bf16.mxu0 0
        %1019 = vmatpush1.bf16.msra.mxu0 0
        %1020 = vmatprep.subr.bf16.mxu0 0
        %1021 = vmatpush1.bf16.msra.mxu0 0
        %1022 = vmatprep.subr.bf16.mxu0 0
        %1023 = vmatpush1.bf16.msra.mxu0 0
        %1024 = vmatprep.subr.bf16.mxu0 0
        %1025 = vmatpush1.bf16.msra.mxu0 0
        %1026 = vmatprep.subr.bf16.mxu0 0
        %1027 = vmatpush1.bf16.msra.mxu0 0
        %1028 = vmatprep.subr.bf16.mxu0 0
        %1029 = vmatpush1.bf16.msra.mxu0 0
        %1030 = vmatprep.mubr.bf16.mxu0 0
        %1031 = vmatmul.mubr.bf16.gmra.mrb[0].mxu0 %v889
        %v1032 = vpop.f32.mrb[0].mxu0
        %v1033 = vadd.f32 %v911, %v1032
        %v1034 = vpop.f32.mrb[0].mxu0
        %v1035 = vadd.f32 %v915, %v1034
        %v1036 = vpop.f32.mrb[0].mxu0
        %v1037 = vpop.f32.mrb[0].mxu0
        %1038 = vdwg.mxu0
        %v1039 = vmax.f32 %v1033, -10.0
        %v1040 = vmin.f32 %v1039, 10.0
        %v1041 = vmax.f32 %v1035, -10.0
        %v1042 = vmin.f32 %v1041, 10.0
        %v1043 = vmul.f32 %v1042, 0.5
        %v1044 = vmul.f32 %v1043, 1.442695
        %v1045 = vpow.pop %v1044
        %v1046 = vld [vmem:[%s661] sm:$0xff]
        %v1047 = vmul.f32 %v1046, %v1045
        %v1048 = vadd.f32 %v1040, %v1047
        %v1049 = vpack.c.bf16 %v1048, %v1048
        %v1050 = vld [vmem:[#allocation7] sm:$0xf]
        %v1051 = vld [vmem:[#allocation7 + $0x4] sm:$0xf]
        %v1052 = vld [vmem:[#allocation7 + $0x8] sm:$0xf]
        %v1053 = vld [vmem:[#allocation7 + $0xc] sm:$0xf]
        %v1054 = vld [vmem:[#allocation7 + $0x10] sm:$0xf]
        %v1055 = vld [vmem:[#allocation7 + $0x14] sm:$0xf]
        %v1056 = vld [vmem:[#allocation7 + $0x18] sm:$0xf]
        %v1057 = vld [vmem:[#allocation7 + $0x1c] sm:$0xf]
        %v1058 = vld [vmem:[#allocation7 + $0x20] sm:$0xf]
        %v1059 = vld [vmem:[#allocation7 + $0x24] sm:$0xf]
        %v1060 = vld [vmem:[#allocation7 + $0x28] sm:$0xf]
        %v1061 = vld [vmem:[#allocation7 + $0x2c] sm:$0xf]
        %v1062 = vld [vmem:[#allocation7 + $0x30] sm:$0xf]
        %v1063 = vld [vmem:[#allocation7 + $0x34] sm:$0xf]
        %v1064 = vld [vmem:[#allocation7 + $0x38] sm:$0xf]
        %v1065 = vld [vmem:[#allocation7 + $0x3c] sm:$0xf]
        %v1066 = vld [vmem:[%s9] sm:$0x1]
        %v1068 = vlaneseq
        %v1069 = vshrl.u32 %v1068, 7
        %v1070 = vsub.s32 0, %v1069
        %v1071 = vrot.slane %v1066, %v1070
        %v1089 = vunpack.c.l.b16 %v1050
        %v1090 = vunpack.c.l.b16 %v1051
        %v1091 = vunpack.c.l.b16 %v1052
        %v1092 = vunpack.c.l.b16 %v1053
        %v1093 = vunpack.c.l.b16 %v1054
        %v1094 = vunpack.c.l.b16 %v1055
        %v1095 = vunpack.c.l.b16 %v1056
        %v1096 = vunpack.c.l.b16 %v1057
        %v1097 = vunpack.c.l.b16 %v1058
        %v1098 = vunpack.c.l.b16 %v1059
        %v1099 = vunpack.c.l.b16 %v1060
        %v1100 = vunpack.c.l.b16 %v1061
        %v1101 = vunpack.c.l.b16 %v1062
        %v1102 = vunpack.c.l.b16 %v1063
        %v1103 = vunpack.c.l.b16 %v1064
        %v1104 = vunpack.c.l.b16 %v1065
        %v1105 = vpack.c.b16 %v1090, %v1089
        %v1106 = vpack.c.b16 %v1092, %v1091
        %v1107 = vpack.c.b16 %v1094, %v1093
        %v1108 = vpack.c.b16 %v1096, %v1095
        %v1109 = vpack.c.b16 %v1098, %v1097
        %v1110 = vpack.c.b16 %v1100, %v1099
        %v1111 = vpack.c.b16 %v1102, %v1101
        %v1112 = vpack.c.b16 %v1104, %v1103
        %1121 = vmatprep.subr.bf16.mxu0 0
        %1122 = vmatpush1.bf16.msra.mxu0 %v1105
        %1123 = vmatprep.subr.bf16.mxu0 0
        %1124 = vmatpush1.bf16.msra.mxu0 %v1106
        %1125 = vmatprep.subr.bf16.mxu0 0
        %1126 = vmatpush1.bf16.msra.mxu0 %v1107
        %1127 = vmatprep.subr.bf16.mxu0 0
        %1128 = vmatpush1.bf16.msra.mxu0 %v1108
        %1129 = vmatprep.subr.bf16.mxu0 0
        %1130 = vmatpush1.bf16.msra.mxu0 %v1109
        %1131 = vmatprep.subr.bf16.mxu0 0
        %1132 = vmatpush1.bf16.msra.mxu0 %v1110
        %1133 = vmatprep.subr.bf16.mxu0 0
        %1134 = vmatpush1.bf16.msra.mxu0 %v1111
        %1135 = vmatprep.subr.bf16.mxu0 0
        %1136 = vmatpush1.bf16.msra.mxu0 %v1112
        %1137 = vmatprep.subr.bf16.mxu0 0
        %1138 = vmatpush1.bf16.msra.mxu0 0
        %1139 = vmatprep.subr.bf16.mxu0 0
        %1140 = vmatpush1.bf16.msra.mxu0 0
        %1141 = vmatprep.subr.bf16.mxu0 0
        %1142 = vmatpush1.bf16.msra.mxu0 0
        %1143 = vmatprep.subr.bf16.mxu0 0
        %1144 = vmatpush1.bf16.msra.mxu0 0
        %1145 = vmatprep.subr.bf16.mxu0 0
        %1146 = vmatpush1.bf16.msra.mxu0 0
        %1147 = vmatprep.subr.bf16.mxu0 0
        %1148 = vmatpush1.bf16.msra.mxu0 0
        %1149 = vmatprep.subr.bf16.mxu0 0
        %1150 = vmatpush1.bf16.msra.mxu0 0
        %1151 = vmatprep.subr.bf16.mxu0 0
        %1152 = vmatpush1.bf16.msra.mxu0 0
        %1153 = vmatprep.mubr.bf16.mxu0 0
        %1154 = vmatmul.mubr.bf16.gmra.mrb[0].mxu0 %v1049
        %v1155 = vpop.f32.mrb[0].mxu0
        %v1156 = vadd.f32 %v1071, %v1155
        %v1157 = vpop.f32.mrb[0].mxu0
        %v1158 = vpop.f32.mrb[0].mxu0
        %v1159 = vpop.f32.mrb[0].mxu0
        %1160 = vdwg.mxu0
        %v1161 = vmax.f32 %v1156, 0.0
        %v1162 = vpack.c.bf16 %v1161, %v1161
        %v1163 = vld [vmem:[#allocation8] sm:$0xf]
        %v1164 = vld [vmem:[#allocation8 + $0x4] sm:$0xf]
        %v1165 = vld [vmem:[#allocation8 + $0x8] sm:$0xf]
        %v1166 = vld [vmem:[#allocation8 + $0xc] sm:$0xf]
        %v1167 = vld [vmem:[#allocation8 + $0x10] sm:$0xf]
        %v1168 = vld [vmem:[#allocation8 + $0x14] sm:$0xf]
        %v1169 = vld [vmem:[#allocation8 + $0x18] sm:$0xf]
        %v1170 = vld [vmem:[#allocation8 + $0x1c] sm:$0xf]
        %v1171 = vld [vmem:[#allocation8 + $0x20] sm:$0xf]
        %v1172 = vld [vmem:[#allocation8 + $0x24] sm:$0xf]
        %v1173 = vld [vmem:[#allocation8 + $0x28] sm:$0xf]
        %v1174 = vld [vmem:[#allocation8 + $0x2c] sm:$0xf]
        %v1175 = vld [vmem:[#allocation8 + $0x30] sm:$0xf]
        %v1176 = vld [vmem:[#allocation8 + $0x34] sm:$0xf]
        %v1177 = vld [vmem:[#allocation8 + $0x38] sm:$0xf]
        %v1178 = vld [vmem:[#allocation8 + $0x3c] sm:$0xf]
        %v1179 = vld [vmem:[%s11] sm:$0x1]
        %v1181 = vlaneseq
        %v1182 = vshrl.u32 %v1181, 7
        %v1183 = vsub.s32 0, %v1182
        %v1184 = vrot.slane %v1179, %v1183
        %v1202 = vunpack.c.l.b16 %v1163
        %v1203 = vunpack.c.l.b16 %v1164
        %v1204 = vunpack.c.l.b16 %v1165
        %v1205 = vunpack.c.l.b16 %v1166
        %v1206 = vunpack.c.l.b16 %v1167
        %v1207 = vunpack.c.l.b16 %v1168
        %v1208 = vunpack.c.l.b16 %v1169
        %v1209 = vunpack.c.l.b16 %v1170
        %v1210 = vunpack.c.l.b16 %v1171
        %v1211 = vunpack.c.l.b16 %v1172
        %v1212 = vunpack.c.l.b16 %v1173
        %v1213 = vunpack.c.l.b16 %v1174
        %v1214 = vunpack.c.l.b16 %v1175
        %v1215 = vunpack.c.l.b16 %v1176
        %v1216 = vunpack.c.l.b16 %v1177
        %v1217 = vunpack.c.l.b16 %v1178
        %v1218 = vpack.c.b16 %v1203, %v1202
        %v1219 = vpack.c.b16 %v1205, %v1204
        %v1220 = vpack.c.b16 %v1207, %v1206
        %v1221 = vpack.c.b16 %v1209, %v1208
        %v1222 = vpack.c.b16 %v1211, %v1210
        %v1223 = vpack.c.b16 %v1213, %v1212
        %v1224 = vpack.c.b16 %v1215, %v1214
        %v1225 = vpack.c.b16 %v1217, %v1216
        %1234 = vmatprep.subr.bf16.mxu0 0
        %1235 = vmatpush1.bf16.msra.mxu0 %v1218
        %1236 = vmatprep.subr.bf16.mxu0 0
        %1237 = vmatpush1.bf16.msra.mxu0 %v1219
        %1238 = vmatprep.subr.bf16.mxu0 0
        %1239 = vmatpush1.bf16.msra.mxu0 %v1220
        %1240 = vmatprep.subr.bf16.mxu0 0
        %1241 = vmatpush1.bf16.msra.mxu0 %v1221
        %1242 = vmatprep.subr.bf16.mxu0 0
        %1243 = vmatpush1.bf16.msra.mxu0 %v1222
        %1244 = vmatprep.subr.bf16.mxu0 0
        %1245 = vmatpush1.bf16.msra.mxu0 %v1223
        %1246 = vmatprep.subr.bf16.mxu0 0
        %1247 = vmatpush1.bf16.msra.mxu0 %v1224
        %1248 = vmatprep.subr.bf16.mxu0 0
        %1249 = vmatpush1.bf16.msra.mxu0 %v1225
        %1250 = vmatprep.subr.bf16.mxu0 0
        %1251 = vmatpush1.bf16.msra.mxu0 0
        %1252 = vmatprep.subr.bf16.mxu0 0
        %1253 = vmatpush1.bf16.msra.mxu0 0
        %1254 = vmatprep.subr.bf16.mxu0 0
        %1255 = vmatpush1.bf16.msra.mxu0 0
        %1256 = vmatprep.subr.bf16.mxu0 0
        %1257 = vmatpush1.bf16.msra.mxu0 0
        %1258 = vmatprep.subr.bf16.mxu0 0
        %1259 = vmatpush1.bf16.msra.mxu0 0
        %1260 = vmatprep.subr.bf16.mxu0 0
        %1261 = vmatpush1.bf16.msra.mxu0 0
        %1262 = vmatprep.subr.bf16.mxu0 0
        %1263 = vmatpush1.bf16.msra.mxu0 0
        %1264 = vmatprep.subr.bf16.mxu0 0
        %1265 = vmatpush1.bf16.msra.mxu0 0
        %1266 = vmatprep.mubr.bf16.mxu0 0
        %1267 = vmatmul.mubr.bf16.gmra.mrb[0].mxu0 %v1162
        %v1268 = vpop.f32.mrb[0].mxu0
        %v1269 = vadd.f32 %v1184, %v1268
        %v1270 = vpop.f32.mrb[0].mxu0
        %v1271 = vpop.f32.mrb[0].mxu0
        %v1272 = vpop.f32.mrb[0].mxu0
        %1273 = vdwg.mxu0
        %v1274 = vmax.f32 %v1269, 0.0
        %v1275 = vpack.c.bf16 %v1274, %v1274
        %v1276 = vld [vmem:[#allocation10] sm:$0xf]
        %v1277 = vld [vmem:[#allocation10 + $0x4] sm:$0xf]
        %v1278 = vld [vmem:[#allocation10 + $0x8] sm:$0xf]
        %v1279 = vld [vmem:[#allocation10 + $0xc] sm:$0xf]
        %v1280 = vld [vmem:[#allocation10 + $0x10] sm:$0xf]
        %v1281 = vld [vmem:[#allocation10 + $0x14] sm:$0xf]
        %v1282 = vld [vmem:[#allocation10 + $0x18] sm:$0xf]
        %v1283 = vld [vmem:[#allocation10 + $0x1c] sm:$0xf]
        %v1284 = vld [vmem:[#allocation10 + $0x20] sm:$0xf]
        %v1285 = vld [vmem:[#allocation10 + $0x24] sm:$0xf]
        %v1286 = vld [vmem:[#allocation10 + $0x28] sm:$0xf]
        %v1287 = vld [vmem:[#allocation10 + $0x2c] sm:$0xf]
        %v1288 = vld [vmem:[#allocation10 + $0x30] sm:$0xf]
        %v1289 = vld [vmem:[#allocation10 + $0x34] sm:$0xf]
        %v1290 = vld [vmem:[#allocation10 + $0x38] sm:$0xf]
        %v1291 = vld [vmem:[#allocation10 + $0x3c] sm:$0xf]
        %v1292 = vld [vmem:[%s13] sm:$0x1]
        %v1294 = vlaneseq
        %v1295 = vshrl.u32 %v1294, 7
        %v1296 = vsub.s32 0, %v1295
        %v1297 = vrot.slane %v1292, %v1296
        %v1315 = vunpack.c.l.b16 %v1276
        %v1316 = vunpack.c.l.b16 %v1277
        %v1317 = vunpack.c.l.b16 %v1278
        %v1318 = vunpack.c.l.b16 %v1279
        %v1319 = vunpack.c.l.b16 %v1280
        %v1320 = vunpack.c.l.b16 %v1281
        %v1321 = vunpack.c.l.b16 %v1282
        %v1322 = vunpack.c.l.b16 %v1283
        %v1323 = vunpack.c.l.b16 %v1284
        %v1324 = vunpack.c.l.b16 %v1285
        %v1325 = vunpack.c.l.b16 %v1286
        %v1326 = vunpack.c.l.b16 %v1287
        %v1327 = vunpack.c.l.b16 %v1288
        %v1328 = vunpack.c.l.b16 %v1289
        %v1329 = vunpack.c.l.b16 %v1290
        %v1330 = vunpack.c.l.b16 %v1291
        %v1331 = vpack.c.b16 %v1316, %v1315
        %v1332 = vpack.c.b16 %v1318, %v1317
        %v1333 = vpack.c.b16 %v1320, %v1319
        %v1334 = vpack.c.b16 %v1322, %v1321
        %v1335 = vpack.c.b16 %v1324, %v1323
        %v1336 = vpack.c.b16 %v1326, %v1325
        %v1337 = vpack.c.b16 %v1328, %v1327
        %v1338 = vpack.c.b16 %v1330, %v1329
        %1347 = vmatprep.subr.bf16.mxu0 0
        %1348 = vmatpush1.bf16.msra.mxu0 %v1331
        %1349 = vmatprep.subr.bf16.mxu0 0
        %1350 = vmatpush1.bf16.msra.mxu0 %v1332
        %1351 = vmatprep.subr.bf16.mxu0 0
        %1352 = vmatpush1.bf16.msra.mxu0 %v1333
        %1353 = vmatprep.subr.bf16.mxu0 0
        %1354 = vmatpush1.bf16.msra.mxu0 %v1334
        %1355 = vmatprep.subr.bf16.mxu0 0
        %1356 = vmatpush1.bf16.msra.mxu0 %v1335
        %1357 = vmatprep.subr.bf16.mxu0 0
        %1358 = vmatpush1.bf16.msra.mxu0 %v1336
        %1359 = vmatprep.subr.bf16.mxu0 0
        %1360 = vmatpush1.bf16.msra.mxu0 %v1337
        %1361 = vmatprep.subr.bf16.mxu0 0
        %1362 = vmatpush1.bf16.msra.mxu0 %v1338
        %1363 = vmatprep.subr.bf16.mxu0 0
        %1364 = vmatpush1.bf16.msra.mxu0 0
        %1365 = vmatprep.subr.bf16.mxu0 0
        %1366 = vmatpush1.bf16.msra.mxu0 0
        %1367 = vmatprep.subr.bf16.mxu0 0
        %1368 = vmatpush1.bf16.msra.mxu0 0
        %1369 = vmatprep.subr.bf16.mxu0 0
        %1370 = vmatpush1.bf16.msra.mxu0 0
        %1371 = vmatprep.subr.bf16.mxu0 0
        %1372 = vmatpush1.bf16.msra.mxu0 0
        %1373 = vmatprep.subr.bf16.mxu0 0
        %1374 = vmatpush1.bf16.msra.mxu0 0
        %1375 = vmatprep.subr.bf16.mxu0 0
        %1376 = vmatpush1.bf16.msra.mxu0 0
        %1377 = vmatprep.subr.bf16.mxu0 0
        %1378 = vmatpush1.bf16.msra.mxu0 0
        %1379 = vmatprep.mubr.bf16.mxu0 0
        %1380 = vmatmul.mubr.bf16.gmra.mrb[0].mxu0 %v1275
        %v1381 = vpop.f32.mrb[0].mxu0
        %v1382 = vadd.f32 %v1297, %v1381
        %v1383 = vpop.f32.mrb[0].mxu0
        %v1384 = vpop.f32.mrb[0].mxu0
        %v1385 = vpop.f32.mrb[0].mxu0
        %1386 = vdwg.mxu0
        %1387 = vst [vmem:[%s632] sm:$0xff] %v1382
        %1388 = vst [vmem:[%s639] sm:$0xff] %v1040
        %1389 = vst [vmem:[%s646] sm:$0xff] %v1042
        %1390 = vst [vmem:[%s653] sm:$0xff] %v1048
        %s1391 = sand.u32 %s353, 1
        %s1392 = scalar_lea.sflag [#allocation4], %s1391
        %s1393 = sand.u32 %s353, 1
        %s1394 = smul.addr %s1393, 8
        %s1395 = scalar_lea.vmem [#allocation11], %s1394
        %s1396 = sand.u32 %s41, 1
        %s1397 = scalar_lea.sflag [#allocation13], %s1396
        %s1398 = sand.u32 %s379, 1
        %s1399 = smul.addr %s1398, 8
        %s1400 = scalar_lea.vmem [#allocation12], %s1399
        %s1401 = sand.u32 %s41, 1
        %s1402 = scalar_lea.sflag [#allocation13], %s1401
        %s1403 = sand.u32 %s405, 1
        %s1404 = smul.addr %s1403, 8
        %s1405 = scalar_lea.vmem [#allocation14], %s1404
        %s1406 = sand.u32 %s431, 1
        %s1407 = scalar_lea.sflag [#allocation16], %s1406
        %s1408 = sand.u32 %s431, 1
        %s1409 = smul.addr %s1408, 8
        %s1410 = scalar_lea.vmem [#allocation15], %s1409
        // Predicated region
        $region97: #{prior_vae_forward.1} parent=75 // pred_check
          %p1411 = pneg %p363
        $region98: #{prior_vae_forward.1} parent=75 // pred_check_branch
          %1413 = sbr.rel (%p1411) target = $region100
        $region99: #{prior_vae_forward.1} parent=75 // pred_region
          %s1415 = ssub.s32 128, 128
          %1416 = vsyncadd %s1392, %s1415
          %s1417 = smul.addr %s41, 128
          %s1418 = scalar_lea.hbm %s14, %s1417
          %s1420 = sshll.u32 %s1395, 4
          %s1421 = int_to_ptr.vmem [resolvable:$true] %s1420
          %1423 = dma.vmem_to_hbm [thread:$0]  %s1421, 128, %s1418, %s1392
        $region100: #{prior_vae_forward.1} parent=75 // pred_fallthru
          _
        // Predicated region
        $region101: #{prior_vae_forward.1} parent=75 // pred_check
          %p1424 = pneg %p389
        $region102: #{prior_vae_forward.1} parent=75 // pred_check_branch
          %1426 = sbr.rel (%p1424) target = $region104
        $region103: #{prior_vae_forward.1} parent=75 // pred_region
          %s1428 = ssub.s32 128, 128
          %1429 = vsyncadd %s1397, %s1428
          %s1430 = smul.addr %s41, 128
          %s1431 = scalar_lea.hbm %s15, %s1430
          %s1433 = sshll.u32 %s1400, 4
          %s1434 = int_to_ptr.vmem [resolvable:$true] %s1433
          %1436 = dma.vmem_to_hbm [thread:$0]  %s1434, 128, %s1431, %s1397
        $region104: #{prior_vae_forward.1} parent=75 // pred_fallthru
          _
        // Predicated region
        $region105: #{prior_vae_forward.1} parent=75 // pred_check
          %p1437 = pneg %p415
        $region106: #{prior_vae_forward.1} parent=75 // pred_check_branch
          %1439 = sbr.rel (%p1437) target = $region108
        $region107: #{prior_vae_forward.1} parent=75 // pred_region
          %s1441 = ssub.s32 128, 128
          %1442 = vsyncadd %s1402, %s1441
          %s1443 = smul.addr %s41, 128
          %s1444 = scalar_lea.hbm %s16, %s1443
          %s1446 = sshll.u32 %s1405, 4
          %s1447 = int_to_ptr.vmem [resolvable:$true] %s1446
          %1449 = dma.vmem_to_hbm [thread:$0]  %s1447, 128, %s1444, %s1402
        $region108: #{prior_vae_forward.1} parent=75 // pred_fallthru
          _
        // Predicated region
        $region109: #{prior_vae_forward.1} parent=75 // pred_check
          %p1450 = pneg %p441
        $region110: #{prior_vae_forward.1} parent=75 // pred_check_branch
          %1452 = sbr.rel (%p1450) target = $region112
        $region111: #{prior_vae_forward.1} parent=75 // pred_region
          %s1454 = ssub.s32 128, 128
          %1455 = vsyncadd %s1407, %s1454
          %s1456 = smul.addr %s41, 128
          %s1457 = scalar_lea.hbm %s17, %s1456
          %s1459 = sshll.u32 %s1410, 4
          %s1460 = int_to_ptr.vmem [resolvable:$true] %s1459
          %1462 = dma.vmem_to_hbm [thread:$0]  %s1460, 128, %s1457, %s1407
        $region112: #{prior_vae_forward.1} parent=75 // pred_fallthru
          _
      $region76: #{prior_vae_forward.1} parent=5 // pred_fallthru
        _
      %p1463 = scmp.le.s32.totalorder 2, %s36
      // Predicated region
      $region113: #{prior_vae_forward.1} parent=5 // pred_check
        %p1464 = pneg %p1463
      $region114: #{prior_vae_forward.1} parent=5 // pred_check_branch
        %1466 = sbr.rel (%p1464) target = $region116
      $region115: #{prior_vae_forward.1} parent=5 // pred_region
        %s1467 = ssub.s32 %s36, 2
        // Predicated region
        $region117: #{prior_vae_forward.1} parent=115 // pred_check
          %p1468 = pneg %p369
        $region118: #{prior_vae_forward.1} parent=115 // pred_check_branch
          %1470 = sbr.rel (%p1468) target = $region120
        $region119: #{prior_vae_forward.1} parent=115 // pred_region
          %s1471 = sand.u32 %s354, 1
          %s1472 = scalar_lea.sflag [#allocation4], %s1471
          %s1473 = sand.u32 %s354, 1
          %s1474 = smul.addr %s1473, 8
          %s1475 = scalar_lea.vmem [#allocation11], %s1474
          %1476 = dma.done %s1472, 128
        $region120: #{prior_vae_forward.1} parent=115 // pred_fallthru
          _
        // Predicated region
        $region121: #{prior_vae_forward.1} parent=115 // pred_check
          %p1477 = pneg %p395
        $region122: #{prior_vae_forward.1} parent=115 // pred_check_branch
          %1479 = sbr.rel (%p1477) target = $region124
        $region123: #{prior_vae_forward.1} parent=115 // pred_region
          %s1480 = sand.u32 %s42, 1
          %s1481 = scalar_lea.sflag [#allocation13], %s1480
          %s1482 = sand.u32 %s380, 1
          %s1483 = smul.addr %s1482, 8
          %s1484 = scalar_lea.vmem [#allocation12], %s1483
          %1485 = dma.done %s1481, 128
        $region124: #{prior_vae_forward.1} parent=115 // pred_fallthru
          _
        // Predicated region
        $region125: #{prior_vae_forward.1} parent=115 // pred_check
          %p1486 = pneg %p421
        $region126: #{prior_vae_forward.1} parent=115 // pred_check_branch
          %1488 = sbr.rel (%p1486) target = $region128
        $region127: #{prior_vae_forward.1} parent=115 // pred_region
          %s1489 = sand.u32 %s42, 1
          %s1490 = scalar_lea.sflag [#allocation13], %s1489
          %s1491 = sand.u32 %s406, 1
          %s1492 = smul.addr %s1491, 8
          %s1493 = scalar_lea.vmem [#allocation14], %s1492
          %1494 = dma.done %s1490, 128
        $region128: #{prior_vae_forward.1} parent=115 // pred_fallthru
          _
        // Predicated region
        $region129: #{prior_vae_forward.1} parent=115 // pred_check
          %p1495 = pneg %p447
        $region130: #{prior_vae_forward.1} parent=115 // pred_check_branch
          %1497 = sbr.rel (%p1495) target = $region132
        $region131: #{prior_vae_forward.1} parent=115 // pred_region
          %s1498 = sand.u32 %s432, 1
          %s1499 = scalar_lea.sflag [#allocation16], %s1498
          %s1500 = sand.u32 %s432, 1
          %s1501 = smul.addr %s1500, 8
          %s1502 = scalar_lea.vmem [#allocation15], %s1501
          %1503 = dma.done %s1499, 128
        $region132: #{prior_vae_forward.1} parent=115 // pred_fallthru
          _
      $region116: #{prior_vae_forward.1} parent=5 // pred_fallthru
        _
    $region6: #{prior_vae_forward.1} parent=1 // loop_footer
      %s40 = sadd.s32 1, %s36
    $region7: #{prior_vae_forward.1} parent=1 // loop_footer_branch
      %35 = sbr.rel target = $region3
    $region8: #{prior_vae_forward.1} parent=1 // loop_exit
      _
    %1504 = vsyncpa [#allocation3], 1
    %s1505 = scalar_lea.sflag [#allocation3], 1
    %1506 = vsyncpa %s1505, 1
    %1507 = vsyncpa [#allocation6], 1
    %1508 = vsyncpa [#allocation9], 1
    %1509 = vsyncpa [#allocation4], 1
    %s1510 = scalar_lea.sflag [#allocation4], 1
    %1511 = vsyncpa %s1510, 1
    %1512 = vsyncpa [#allocation13], 1
    %s1513 = scalar_lea.sflag [#allocation13], 1
    %1514 = vsyncpa %s1513, 1
    %1515 = vsyncpa [#allocation16], 1
    %s1516 = scalar_lea.sflag [#allocation16], 1
    %1517 = vsyncpa %s1516, 1

</llo_original>
